<compile_context>
chip_gen: v5e
topology: v5e:2x2
jax: 0.10.0
libtpu: 0.0.40
codegen_flags: <defaults>
</compile_context>

<pallas_src>
import math
from functools import partial

import jax
import jax.numpy as jnp
from jax import lax
from jax.experimental import pallas as pl
from jax.experimental.pallas import tpu as pltpu

EPS = 1e-5
BN_SCALE = 1.0 / math.sqrt(1.0 + EPS)  # eval-mode BatchNorm3d: gamma=1, beta=0, rm=0, rv=1


def _round_up(x, m):
    return (x + m - 1) // m * m


# ---------------------------------------------------------------------------
# Pallas fused matmul:  out[c, m] = act( (W @ A)[c, m] * scale[c] + bias[c] (+ res[c, m]) )
# Lanes carry the flattened spatial axis M; sublanes carry the output channels.
# ---------------------------------------------------------------------------
def _mm_kernel(w_ref, a_ref, s_ref, b_ref, o_ref, *, relu):
    acc = jnp.dot(w_ref[...], a_ref[...], preferred_element_type=jnp.float32)
    y = acc * s_ref[...] + b_ref[...]
    if relu:
        y = jnp.maximum(y, 0.0)
    o_ref[...] = y


def _mm_kernel_res(w_ref, a_ref, s_ref, b_ref, r_ref, o_ref, *, relu):
    acc = jnp.dot(w_ref[...], a_ref[...], preferred_element_type=jnp.float32)
    y = acc * s_ref[...] + b_ref[...] + r_ref[...]
    if relu:
        y = jnp.maximum(y, 0.0)
    o_ref[...] = y


def matmul_cm(w, a, scale, bias, relu, res=None):
    """w: (C, K), a: (K, M).  Returns f32 (C, M).  bf16 operands, f32 accumulate."""
    C, K = w.shape
    K2, M = a.shape
    assert K == K2
    Cp = _round_up(C, 8)                 # channels on sublanes, pad to 8 only
    Kp = _round_up(K, 16)                # single full-K block (no pad to 128)
    Mp0 = _round_up(max(M, 1), 512)
    # lane tile: as big as a ~4 MiB bf16 A-block allows, capped at 8192
    by_vmem = max(512, ((4 * 1024 * 1024) // (Kp * 2)) // 512 * 512)
    tn = int(min(8192, by_vmem, Mp0))
    Mp = _round_up(M, tn)

    w_p = jnp.pad(w.astype(jnp.bfloat16), ((0, Cp - C), (0, Kp - K)))
    a_p = jnp.pad(a.astype(jnp.bfloat16), ((0, Kp - K), (0, Mp - M)))
    s_p = jnp.pad(scale.astype(jnp.float32).reshape(-1, 1), ((0, Cp - C), (0, 0)))
    b_p = jnp.pad(bias.astype(jnp.float32).reshape(-1, 1), ((0, Cp - C), (0, 0)))

    args = [w_p, a_p, s_p, b_p]
    in_specs = [
        pl.BlockSpec((Cp, Kp), lambda i: (0, 0)),   # weights resident across grid
        pl.BlockSpec((Kp, tn), lambda i: (0, i)),   # full-K, lane-tiled activations
        pl.BlockSpec((Cp, 1), lambda i: (0, 0)),    # per-channel scale
        pl.BlockSpec((Cp, 1), lambda i: (0, 0)),    # per-channel bias
    ]
    if res is not None:
        r_p = jnp.pad(res.astype(jnp.float32), ((0, Cp - C), (0, Mp - M)))
        args.append(r_p)
        in_specs.append(pl.BlockSpec((Cp, tn), lambda i: (0, i)))
        kernel = partial(_mm_kernel_res, relu=relu)
    else:
        kernel = partial(_mm_kernel, relu=relu)

    out = pl.pallas_call(
        kernel,
        out_shape=jax.ShapeDtypeStruct((Cp, Mp), jnp.float32),
        grid_spec=pltpu.PrefetchScalarGridSpec(
            num_scalar_prefetch=0,
            grid=(Mp // tn,),
            in_specs=in_specs,
            out_specs=pl.BlockSpec((Cp, tn), lambda i: (0, i)),
        ),
        compiler_params=pltpu.CompilerParams(
            dimension_semantics=("parallel",),
            vmem_limit_bytes=32 * 1024 * 1024,   # worst-case use ~9 MiB; safe on v5e/v6e/v7x
        ),
    )(*args)
    return out[:C, :M]


# ---------------------------------------------------------------------------
# Conv3d / ConvTranspose3d wrappers (channels-first, PyTorch weight layouts)
# ---------------------------------------------------------------------------
@partial(jax.jit, static_argnames=("stride", "dilation", "padding", "relu"))
def conv3d(x, w, scale, bias, res=None, *, stride=1, dilation=1, padding=0, relu=False):
    """x: (N, Cin, D, H, W); w: (Cout, Cin, kd, kh, kw).
    Fused y = act(conv(x) * scale[c] + bias[c] (+ res))."""
    N, Cin, D, H, W = x.shape
    Cout, Cin2, kd, kh, kw = w.shape
    assert Cin == Cin2
    s, dil, p = stride, dilation, padding
    xp = jnp.pad(x, ((0, 0), (0, 0), (p, p), (p, p), (p, p)))
    Do = (D + 2 * p - dil * (kd - 1) - 1) // s + 1
    Ho = (H + 2 * p - dil * (kh - 1) - 1) // s + 1
    Wo = (W + 2 * p - dil * (kw - 1) - 1) // s + 1

    taps = []
    for a in range(kd):
        for b in range(kh):
            for c in range(kw):
                taps.append(xp[:, :,
                               a * dil: a * dil + (Do - 1) * s + 1: s,
                               b * dil: b * dil + (Ho - 1) * s + 1: s,
                               c * dil: c * dil + (Wo - 1) * s + 1: s])
    # A[(tap, cin), (n, do, ho, wo)]  (fused into one bf16 write by XLA under jit)
    A = jnp.stack(taps, axis=0).transpose(0, 2, 1, 3, 4, 5)
    A = A.reshape(kd * kh * kw * Cin, N * Do * Ho * Wo)
    B = w.transpose(0, 2, 3, 4, 1).reshape(Cout, kd * kh * kw * Cin)
    resm = None
    if res is not None:
        resm = res.transpose(1, 0, 2, 3, 4).reshape(Cout, N * Do * Ho * Wo)
    y = matmul_cm(B, A, scale, bias, relu, resm)
    return y.reshape(Cout, N, Do, Ho, Wo).transpose(1, 0, 2, 3, 4)


@partial(jax.jit, static_argnames=("relu",))
def deconv3d_2x(x, w, scale, bias, *, relu=True):
    """ConvTranspose3d kernel=2 stride=2, fused BN scale/bias + ReLU.
    x: (N, Cin, D, H, W); w: (Cin, Cout, 2, 2, 2)."""
    N, Cin, D, H, W = x.shape
    Cout = w.shape[1]
    A = x.transpose(1, 0, 2, 3, 4).reshape(Cin, N * D * H * W)
    B = w.transpose(2, 3, 4, 1, 0).reshape(8 * Cout, Cin)
    z = matmul_cm(B, A, jnp.tile(scale, 8), jnp.tile(bias, 8), relu)
    # TODO(synk): the 2x2x2 sub-voxel interleave could be emitted directly by the out_spec.
    z = z.reshape(2, 2, 2, Cout, N, D, H, W)
    z = z.transpose(4, 3, 5, 0, 6, 1, 7, 2).reshape(N, Cout, 2 * D, 2 * H, 2 * W)
    return z


# ---------------------------------------------------------------------------
# Small glue ops (plain JAX)
# ---------------------------------------------------------------------------
def maxpool3d(x, k):
    return lax.reduce_window(x, -jnp.inf, lax.max,
                             (1, 1, k, k, k), (1, 1, k, k, k), 'VALID')


def trilinear_resize(x, size):
    """align_corners=True trilinear resize of (N,C,D,H,W) to spatial `size`."""
    def interp_axis(arr, in_s, out_s, axis):
        if in_s == out_s:
            return arr
        if out_s == 1:
            return jnp.take(arr, jnp.zeros((1,), jnp.int32), axis=axis)
        pos = jnp.arange(out_s, dtype=jnp.float32) * ((in_s - 1) / (out_s - 1))
        i0 = jnp.clip(jnp.floor(pos).astype(jnp.int32), 0, in_s - 1)
        i1 = jnp.clip(i0 + 1, 0, in_s - 1)
        w1 = pos - i0.astype(jnp.float32)
        x0 = jnp.take(arr, i0, axis=axis)
        x1 = jnp.take(arr, i1, axis=axis)
        shp = [1] * arr.ndim
        shp[axis] = out_s
        w1 = w1.reshape(shp)
        return x0 * (1.0 - w1) + x1 * w1

    _, _, D, H, W = x.shape
    Do, Ho, Wo = size
    x = interp_axis(x, D, Do, 2)
    x = interp_axis(x, H, Ho, 3)
    x = interp_axis(x, W, Wo, 4)
    return x


# ---------------------------------------------------------------------------
# Parameter construction (deterministic, mirroring CENet.__init__ shapes)
# ---------------------------------------------------------------------------
class _KeyGen:
    def __init__(self, seed):
        self._key = jax.random.PRNGKey(seed)

    def __call__(self):
        self._key, sub = jax.random.split(self._key)
        return sub


def _conv_w(kg, cout, cin, kd, kh, kw):
    n = kd * kh * kw * cout
    return jax.random.normal(kg(), (cout, cin, kd, kh, kw), jnp.float32) * math.sqrt(2.0 / n)


def _conv_b(kg, cout):
    return jax.random.normal(kg(), (cout,), jnp.float32) * 0.01


def _deconv_w(kg, cin, cout):
    return jax.random.normal(kg(), (cin, cout, 2, 2, 2), jnp.float32) * math.sqrt(2.0 / (8 * cout))


def init_params(seg_classes=2, k=4, seed=0):
    kg = _KeyGen(seed)
    P = {}
    P['l0_w1'] = _conv_w(kg, k, 1, 3, 3, 3)
    P['l0_w2'] = _conv_w(kg, 2 * k, k, 3, 3, 3)
    P['l0_w3'] = _conv_w(kg, 2 * k, 2 * k, 3, 3, 3)

    def make_layer(inplanes, planes, blocks, stride):
        ps = []
        blk = {'w1': _conv_w(kg, planes, inplanes, 3, 3, 3),
               'w2': _conv_w(kg, planes, planes, 3, 3, 3),
               'stride': stride}
        if stride != 1 or inplanes != planes:
            blk['wd'] = _conv_w(kg, planes, inplanes, 1, 1, 1)
        ps.append(blk)
        for _ in range(1, blocks):
            ps.append({'w1': _conv_w(kg, planes, planes, 3, 3, 3),
                       'w2': _conv_w(kg, planes, planes, 3, 3, 3),
                       'stride': 1})
        return ps, planes

    P['layer1'], c = make_layer(2 * k, 2 * k, 4, 2)
    P['layer2'], c = make_layer(c, 4 * k, 5, 2)
    P['layer3'], c = make_layer(c, 8 * k, 7, 2)

    C = 8 * k
    P['dac'] = {'d1_w': _conv_w(kg, C, C, 3, 3, 3), 'd1_b': _conv_b(kg, C),
                'd2_w': _conv_w(kg, C, C, 3, 3, 3), 'd2_b': _conv_b(kg, C),
                'd3_w': _conv_w(kg, C, C, 3, 3, 3), 'd3_b': _conv_b(kg, C),
                'c11_w': _conv_w(kg, C, C, 1, 1, 1), 'c11_b': _conv_b(kg, C)}
    P['spp'] = {'w': _conv_w(kg, 1, C, 1, 1, 1), 'b': _conv_b(kg, 1)}

    P['up3'] = {'w': _deconv_w(kg, 8 * k + 4, 8 * k), 'b': _conv_b(kg, 8 * k)}
    P['class3'] = {'w': _conv_w(kg, 4 * k, 12 * k, 3, 3, 3)}
    P['up2'] = {'w': _deconv_w(kg, 4 * k, 4 * k), 'b': _conv_b(kg, 4 * k)}
    P['class2'] = {'w': _conv_w(kg, 2 * k, 6 * k, 3, 3, 3)}
    P['up1'] = {'w': _deconv_w(kg, 2 * k, 2 * k), 'b': _conv_b(kg, 2 * k)}
    P['class1'] = {'w': _conv_w(kg, 2 * k, 4 * k, 3, 3, 3),
                   'wf': _conv_w(kg, seg_classes, 2 * k, 3, 3, 3)}
    return P


# ---------------------------------------------------------------------------
# Module applications
# ---------------------------------------------------------------------------
def _bn_vecs(c):
    return jnp.full((c,), BN_SCALE, jnp.float32), jnp.zeros((c,), jnp.float32)


def _id_vecs(c):
    return jnp.ones((c,), jnp.float32), jnp.zeros((c,), jnp.float32)


def layer0_apply(P, x, k):
    s1, z1 = _bn_vecs(k)
    s2, z2 = _bn_vecs(2 * k)
    x = conv3d(x, P['l0_w1'], s1, z1, padding=1, relu=True)
    x = conv3d(x, P['l0_w2'], s2, z2, padding=1, relu=True)
    # duplicated 'bn2' key in the OrderedDict => conv3 has no BN, just ReLU
    s3, z3 = _id_vecs(2 * k)
    x = conv3d(x, P['l0_w3'], s3, z3, padding=1, relu=True)
    return x


def block_apply(p, x):
    planes = p['w1'].shape[0]
    bn_s, bn_b = _bn_vecs(planes)
    stride = p['stride']
    h = conv3d(x, p['w1'], bn_s, bn_b, stride=stride, padding=1, relu=True)
    if 'wd' in p:
        res = conv3d(x, p['wd'], bn_s, bn_b, stride=stride, padding=0, relu=False)
    else:
        res = x
    # conv2 + BN + residual add + ReLU fused into one kernel epilogue
    return conv3d(h, p['w2'], bn_s, bn_b, res, stride=1, padding=1, relu=True)


def dac_apply(p, x):
    C = x.shape[1]
    ones, _ = _id_vecs(C)
    t1 = conv3d(x, p['d1_w'], ones, p['d1_b'], dilation=1, padding=1, relu=False)
    d1 = jnp.maximum(t1, 0.0)
    t2 = conv3d(x, p['d2_w'], ones, p['d2_b'], dilation=3, padding=3, relu=False)
    d2 = conv3d(t2, p['c11_w'], ones, p['c11_b'], padding=0, relu=True)
    t21 = conv3d(t1, p['d2_w'], ones, p['d2_b'], dilation=3, padding=3, relu=False)
    d3 = conv3d(t21, p['c11_w'], ones, p['c11_b'], padding=0, relu=True)
    t321 = conv3d(t21, p['d3_w'], ones, p['d3_b'], dilation=5, padding=5, relu=False)
    d4 = conv3d(t321, p['c11_w'], ones, p['c11_b'], padding=0, relu=True)
    return x + d1 + d2 + d3 + d4


def spp_apply(p, x):
    _, C, D, H, W = x.shape
    one = jnp.ones((1,), jnp.float32)
    outs = []
    for ksz in (2, 3, 5, 6):
        pooled = maxpool3d(x, ksz)
        y = conv3d(pooled, p['w'], one, p['b'], padding=0, relu=False)
        outs.append(trilinear_resize(y, (D, H, W)))
    return jnp.concatenate(outs + [x], axis=1)


def up_apply(p, x):
    cout = p['w'].shape[1]
    bn_s, _ = _bn_vecs(cout)
    return deconv3d_2x(x, p['w'], bn_s, p['b'] * BN_SCALE, relu=True)


def cbr_apply(p, x):
    cout = p['w'].shape[0]
    bn_s, bn_b = _bn_vecs(cout)
    return conv3d(x, p['w'], bn_s, bn_b, padding=1, relu=True)


def cenet_forward(P, x_ncdhw, k=4):
    x = x_ncdhw.astype(jnp.float32)
    x0 = layer0_apply(P, x, k)
    x1 = x0
    for blk in P['layer1']:
        x1 = block_apply(blk, x1)
    x2 = x1
    for blk in P['layer2']:
        x2 = block_apply(blk, x2)
    x3 = x2
    for blk in P['layer3']:
        x3 = block_apply(blk, x3)
    x3 = spp_apply(P['spp'], dac_apply(P['dac'], x3))

    u3 = up_apply(P['up3'], x3)
    d3 = cbr_apply(P['class3'], jnp.concatenate([u3, x2], axis=1))
    u2 = up_apply(P['up2'], d3)
    d2 = cbr_apply(P['class2'], jnp.concatenate([u2, x1], axis=1))
    u1 = up_apply(P['up1'], d2)
    d1 = cbr_apply(P['class1'], jnp.concatenate([u1, x0], axis=1))
    seg = P['class1']['wf'].shape[0]
    s_id, z_id = _id_vecs(seg)
    out = conv3d(d1, P['class1']['wf'], s_id, z_id, padding=1, relu=False)
    return {'y': out}


# ---------------------------------------------------------------------------
if __name__ == "__main__":
    K_CH = 4        # growth factor 'k' (small for the synthetic test)
    SEG = 2
    # spatial 48 is the smallest size compatible with the SPP 6x6x6 pooling branch
    # after three stride-2 encoder stages (48 -> 24 -> 12 -> 6).
    x = jax.random.normal(jax.random.PRNGKey(0), (1, 1, 48, 48, 48), jnp.float32)

    params = init_params(seg_classes=SEG, k=K_CH, seed=0)
    out = cenet_forward(params, x, k=K_CH)['y']
    out = jax.block_until_ready(out)

    assert out.shape == (1, SEG, 48, 48, 48), out.shape
    assert bool(jnp.all(jnp.isfinite(out)))
    print("KERNEL_OK")
</pallas_src>

<mosaic_0001>
module attributes {stable_mosaic.version = 11 : i64} {
  func.func @_mm_kernel(%arg0: i32, %arg1: memref<8x32xbf16, #tpu.memory_space<vmem>>, %arg2: memref<32x8192xbf16, #tpu.memory_space<vmem>>, %arg3: memref<8x1xf32, #tpu.memory_space<vmem>>, %arg4: memref<8x1xf32, #tpu.memory_space<vmem>>, %arg5: memref<8x8192xf32, #tpu.memory_space<vmem>>) attributes {dimension_semantics = [#tpu.dimension_semantics<parallel>], iteration_bounds = array<i64: 14>, scalar_prefetch = 0 : i64, scratch_operands = 0 : i64, tpu.core_type = #tpu.core_type<tc>, window_params = [{pipeline_mode = #tpu.pipeline_mode<synchronous>, transform_indices = @transform_0, window_bounds = array<i64: 8, 32>}, {transform_indices = @transform_1, window_bounds = array<i64: 32, 8192>}, {pipeline_mode = #tpu.pipeline_mode<synchronous>, transform_indices = @transform_2, window_bounds = array<i64: 8, 1>}, {pipeline_mode = #tpu.pipeline_mode<synchronous>, transform_indices = @transform_3, window_bounds = array<i64: 8, 1>}, {transform_indices = @transform_4, window_bounds = array<i64: 8, 8192>}]} {
    %c0 = arith.constant 0 : index
    %c0_0 = arith.constant 0 : index
    %0 = vector.load %arg1[%c0, %c0_0] : memref<8x32xbf16, #tpu.memory_space<vmem>>, vector<8x32xbf16>
    %c0_1 = arith.constant 0 : index
    %c0_2 = arith.constant 0 : index
    %1 = vector.load %arg2[%c0_1, %c0_2] : memref<32x8192xbf16, #tpu.memory_space<vmem>>, vector<32x8192xbf16>
    %cst = arith.constant dense<0.000000e+00> : vector<8x8192xf32>
    %2 = tpu.matmul %0, %1, %cst {dimension_numbers = #tpu.dot_dimension_numbers<[1], [0], [0], [1], [0, 0, 1, 1], [], []>} : vector<8x32xbf16>, vector<32x8192xbf16>, vector<8x8192xf32> -> vector<8x8192xf32>
    %c0_3 = arith.constant 0 : index
    %c0_4 = arith.constant 0 : index
    %3 = vector.load %arg3[%c0_3, %c0_4] : memref<8x1xf32, #tpu.memory_space<vmem>>, vector<8x1xf32>
    %4 = vector.broadcast %3 : vector<8x1xf32> to vector<8x8192xf32>
    %5 = arith.mulf %2, %4 : vector<8x8192xf32>
    %c0_5 = arith.constant 0 : index
    %c0_6 = arith.constant 0 : index
    %6 = vector.load %arg4[%c0_5, %c0_6] : memref<8x1xf32, #tpu.memory_space<vmem>>, vector<8x1xf32>
    %7 = vector.broadcast %6 : vector<8x1xf32> to vector<8x8192xf32>
    %8 = arith.addf %5, %7 : vector<8x8192xf32>
    %cst_7 = arith.constant 0.000000e+00 : f32
    %9 = vector.broadcast %cst_7 : f32 to vector<8x8192xf32>
    %10 = arith.maximumf %8, %9 : vector<8x8192xf32>
    %c0_8 = arith.constant 0 : index
    %c0_9 = arith.constant 0 : index
    %11 = vector.load %arg5[%c0_8, %c0_9] : memref<8x8192xf32, #tpu.memory_space<vmem>>, vector<8x8192xf32>
    tpu.vector_store %arg5[%c0_8, %c0_9], %10 {strides = array<i32>} : memref<8x8192xf32, #tpu.memory_space<vmem>>, vector<8x8192xf32>,
    return
  }
  func.func @transform_0(%arg0: i32) -> (i32, i32) {
    %c0_i32 = arith.constant 0 : i32
    %c0_i32_0 = arith.constant 0 : i32
    %c0_i32_1 = arith.constant 0 : i32
    return %c0_i32, %c0_i32_0 : i32, i32
  }
  func.func @transform_1(%arg0: i32) -> (i32, i32) {
    %c0_i32 = arith.constant 0 : i32
    %c0_i32_0 = arith.constant 0 : i32
    return %c0_i32, %arg0 : i32, i32
  }
  func.func @transform_2(%arg0: i32) -> (i32, i32) {
    %c0_i32 = arith.constant 0 : i32
    %c0_i32_0 = arith.constant 0 : i32
    %c0_i32_1 = arith.constant 0 : i32
    return %c0_i32, %c0_i32_0 : i32, i32
  }
  func.func @transform_3(%arg0: i32) -> (i32, i32) {
    %c0_i32 = arith.constant 0 : i32
    %c0_i32_0 = arith.constant 0 : i32
    %c0_i32_1 = arith.constant 0 : i32
    return %c0_i32, %c0_i32_0 : i32, i32
  }
  func.func @transform_4(%arg0: i32) -> (i32, i32) {
    %c0_i32 = arith.constant 0 : i32
    %c0_i32_0 = arith.constant 0 : i32
    return %c0_i32, %arg0 : i32, i32
  }
}

</mosaic_0001>

<llo_original>
// kernel: conv3d.1
$region0: #{conv3d.1}
  #allocation0 [shape = 'u32[]', space=smem, size = 0x4, offset = 0x4, fixed_abs, tag = 'smem constant byte address 0x4 - core index']
  #allocation1 [shape = 'u32[72,128]{1,0:T(1,128)}', space=vmem, size = 0x9000, scoped, tag = 'internal scratch']
  %s0 = inlined_call_operand.vmem [shape: bf16[8,32], index: 0, kind: input, shape index: {}]
  %s1 = inlined_call_operand.vmem [shape: bf16[32,114688], index: 1, kind: input, shape index: {}]
  %s2 = inlined_call_operand.vmem [shape: f32[8,1], index: 2, kind: input, shape index: {}]
  %s3 = inlined_call_operand.vmem [shape: f32[8,1], index: 3, kind: input, shape index: {}]
  %s4 = inlined_call_operand.vmem [shape: f32[8,114688], index: 4, kind: output, shape index: {}]
  %s5 = sld [smem:[#allocation0]]
  $region72: #{conv3d.1} parent=0
    _
  %s7 = ssub.s32 1, %s5
  %s8 = scalar_select 0, %s7, %s5
  $region1: #{conv3d.1} parent=0
    #allocation2 [shape = 'u8[1048576]{0}', space=vmem, size = 0x100000, scoped, tag = 'input window, operand 1']
    loop: start=0, step=1, limit=16
    $region2: #{conv3d.1} parent=1 // loop_pre_header
      _
    $region3: #{conv3d.1} parent=1 // loop_header
      %s10 = sphi 0, %s14
      %p11 = scmp.ge.s32.totalorder %s10, 16
      %s18 = sphi 0, %s18
      %s20 = sphi 0, %s18
      %s21 = sphi 0, %s20
      %s35 = sphi 0, %s21
      %s41 = sphi 0, %s43
      %s44 = sphi 0, %s41
      %s45 = sphi 0, %s44
      %s61 = sphi 0, %s45
      %s65 = sphi 0, %s65
      %s67 = sphi 0, %s65
      %s68 = sphi 0, %s67
      %s82 = sphi 0, %s68
      %s86 = sphi 0, %s86
      %s88 = sphi 0, %s86
      %s89 = sphi 0, %s88
      %s103 = sphi 0, %s89
      %s109 = sphi 0, %s111
      %s112 = sphi 0, %s109
      %s113 = sphi 0, %s112
      %s129 = sphi 0, %s113
    $region4: #{conv3d.1} parent=1 // loop_header_branch
      %13 = sbr.rel (%p11) target = $region8
    $region5: #{conv3d.1} parent=1 // loop_body
      %s15 = ssub.s32 %s10, 1
      %s16 = ssub.s32 %s10, 2
      %s17 = sadd.s32 %s10, 1
      %s19 = sadd.s32 %s18, 1
      %p22 = scmp.eq.s32.totalorder %s10, 13
      %p23 = scmp.ne.s32.totalorder %s18, %s20
      %p24 = scmp.eq.s32.totalorder %s10, 0
      %p25 = por %p23, %p24
      %p26 = scmp.ne.s32.totalorder %s18, %s20
      %p27 = scmp.eq.s32.totalorder %s15, 13
      %p28 = por %p26, %p27
      %p29 = scmp.ne.s32.totalorder %s20, %s21
      %p30 = scmp.eq.s32.totalorder %s15, 0
      %p31 = por %p29, %p30
      %p32 = scmp.ne.s32.totalorder %s20, %s21
      %p33 = scmp.eq.s32.totalorder %s16, 13
      %p34 = por %p32, %p33
      %p36 = scmp.ne.s32.totalorder %s21, %s35
      %p37 = scmp.eq.s32.totalorder %s16, 0
      %p38 = por %p36, %p37
      %s39 = ssub.s32 %s10, %s17
      %p40 = scmp.eq.s32.totalorder %s39, 0
      %s42 = sadd.s32 %s41, 1
      %s43 = scalar_select %p40, %s41, %s42
      %p46 = pneg %p40
      %p47 = scmp.eq.s32.totalorder %s10, 13
      %p48 = por %p46, %p47
      %p49 = scmp.ne.s32.totalorder %s41, %s44
      %p50 = scmp.eq.s32.totalorder %s10, 0
      %p51 = por %p49, %p50
      %p52 = scmp.ne.s32.totalorder %s41, %s44
      %p53 = scmp.eq.s32.totalorder %s15, 13
      %p54 = por %p52, %p53
      %p55 = scmp.ne.s32.totalorder %s44, %s45
      %p56 = scmp.eq.s32.totalorder %s15, 0
      %p57 = por %p55, %p56
      %p58 = scmp.ne.s32.totalorder %s44, %s45
      %p59 = scmp.eq.s32.totalorder %s16, 13
      %p60 = por %p58, %p59
      %p62 = scmp.ne.s32.totalorder %s45, %s61
      %p63 = scmp.eq.s32.totalorder %s16, 0
      %p64 = por %p62, %p63
      %s66 = sadd.s32 %s65, 1
      %p69 = scmp.eq.s32.totalorder %s10, 13
      %p70 = scmp.ne.s32.totalorder %s65, %s67
      %p71 = scmp.eq.s32.totalorder %s10, 0
      %p72 = por %p70, %p71
      %p73 = scmp.ne.s32.totalorder %s65, %s67
      %p74 = scmp.eq.s32.totalorder %s15, 13
      %p75 = por %p73, %p74
      %p76 = scmp.ne.s32.totalorder %s67, %s68
      %p77 = scmp.eq.s32.totalorder %s15, 0
      %p78 = por %p76, %p77
      %p79 = scmp.ne.s32.totalorder %s67, %s68
      %p80 = scmp.eq.s32.totalorder %s16, 13
      %p81 = por %p79, %p80
      %p83 = scmp.ne.s32.totalorder %s68, %s82
      %p84 = scmp.eq.s32.totalorder %s16, 0
      %p85 = por %p83, %p84
      %s87 = sadd.s32 %s86, 1
      %p90 = scmp.eq.s32.totalorder %s10, 13
      %p91 = scmp.ne.s32.totalorder %s86, %s88
      %p92 = scmp.eq.s32.totalorder %s10, 0
      %p93 = por %p91, %p92
      %p94 = scmp.ne.s32.totalorder %s86, %s88
      %p95 = scmp.eq.s32.totalorder %s15, 13
      %p96 = por %p94, %p95
      %p97 = scmp.ne.s32.totalorder %s88, %s89
      %p98 = scmp.eq.s32.totalorder %s15, 0
      %p99 = por %p97, %p98
      %p100 = scmp.ne.s32.totalorder %s88, %s89
      %p101 = scmp.eq.s32.totalorder %s16, 13
      %p102 = por %p100, %p101
      %p104 = scmp.ne.s32.totalorder %s89, %s103
      %p105 = scmp.eq.s32.totalorder %s16, 0
      %p106 = por %p104, %p105
      %s107 = ssub.s32 %s10, %s17
      %p108 = scmp.eq.s32.totalorder %s107, 0
      %s110 = sadd.s32 %s109, 1
      %s111 = scalar_select %p108, %s109, %s110
      %p114 = pneg %p108
      %p115 = scmp.eq.s32.totalorder %s10, 13
      %p116 = por %p114, %p115
      %p117 = scmp.ne.s32.totalorder %s109, %s112
      %p118 = scmp.eq.s32.totalorder %s10, 0
      %p119 = por %p117, %p118
      %p120 = scmp.ne.s32.totalorder %s109, %s112
      %p121 = scmp.eq.s32.totalorder %s15, 13
      %p122 = por %p120, %p121
      %p123 = scmp.ne.s32.totalorder %s112, %s113
      %p124 = scmp.eq.s32.totalorder %s15, 0
      %p125 = por %p123, %p124
      %p126 = scmp.ne.s32.totalorder %s112, %s113
      %p127 = scmp.eq.s32.totalorder %s16, 13
      %p128 = por %p126, %p127
      %p130 = scmp.ne.s32.totalorder %s113, %s129
      %p131 = scmp.eq.s32.totalorder %s16, 0
      %p132 = por %p130, %p131
      %p133 = scmp.le.s32.totalorder 1, %s10
      %p134 = scmp.lt.s32.totalorder %s10, 15
      %p135 = pnand %p133, %p134
      %p136 = pneg %p135
      // Predicated region
      $region9: #{conv3d.1} parent=5 // pred_check
        _
      $region10: #{conv3d.1} parent=5 // pred_check_branch
        %138 = sbr.rel (%p135) target = $region12
      $region11: #{conv3d.1} parent=5 // pred_region
        %s139 = ssub.s32 %s10, 1
        // Predicated region
        $region13: #{conv3d.1} parent=11 // pred_check
          %p140 = pneg %p31
        $region14: #{conv3d.1} parent=11 // pred_check_branch
          %142 = sbr.rel (%p140) target = $region16
        $region15: #{conv3d.1} parent=11 // pred_region
          _
        $region16: #{conv3d.1} parent=11 // pred_fallthru
          _
        // Predicated region
        $region17: #{conv3d.1} parent=11 // pred_check
          %p143 = pneg %p78
        $region18: #{conv3d.1} parent=11 // pred_check_branch
          %145 = sbr.rel (%p143) target = $region20
        $region19: #{conv3d.1} parent=11 // pred_region
          _
        $region20: #{conv3d.1} parent=11 // pred_fallthru
          _
        // Predicated region
        $region21: #{conv3d.1} parent=11 // pred_check
          %p146 = pneg %p99
        $region22: #{conv3d.1} parent=11 // pred_check_branch
          %148 = sbr.rel (%p146) target = $region24
        $region23: #{conv3d.1} parent=11 // pred_region
          _
        $region24: #{conv3d.1} parent=11 // pred_fallthru
          _
      $region12: #{conv3d.1} parent=5 // pred_fallthru
        _
      %p149 = scmp.lt.s32.totalorder %s10, 14
      // Predicated region
      $region25: #{conv3d.1} parent=5 // pred_check
        %p150 = pneg %p149
      $region26: #{conv3d.1} parent=5 // pred_check_branch
        %152 = sbr.rel (%p150) target = $region28
      $region27: #{conv3d.1} parent=5 // pred_region
        // Predicated region
        $region29: #{conv3d.1} parent=27 // pred_check
          %p153 = pneg %p51
        $region30: #{conv3d.1} parent=27 // pred_check_branch
          %155 = sbr.rel (%p153) target = $region32
        $region31: #{conv3d.1} parent=27 // pred_region
          %s156 = sand.u32 %s41, 1
          %s157 = sand.u32 %s41, 1
          %s158 = smul.addr %s157, 1024
          %s159 = scalar_lea.vmem [#allocation2], %s158
          %s160 = smul.u32 64, %s10
          %s161 = smul.addr %s160, 4
          %s162 = scalar_lea.vmem %s1, %s161
          // Predicated region
          $region33: #{conv3d.1} parent=31 // pred_check
            _
          $region34: #{conv3d.1} parent=31 // pred_check_branch
            %164 = sbr.rel (0) target = $region36
          $region35: #{conv3d.1} parent=31 // pred_region
            // Predicated region
            $region37: #{conv3d.1} parent=35 // pred_check
              _
            $region38: #{conv3d.1} parent=35 // pred_check_branch
              %166 = sbr.rel (0) target = $region40
            $region39: #{conv3d.1} parent=35 // pred_region
              loop: start=0, step=1, limit=1
              $region41: #{conv3d.1} parent=39 // loop_pre_header
                _
              $region42: #{conv3d.1} parent=39 // loop_header
                %s168 = sphi 0, %s172
                %p169 = scmp.ge.s32.totalorder %s168, 1
                %s173 = sphi %s162, %s162
                %s174 = sphi %s159, %s159
              $region43: #{conv3d.1} parent=39 // loop_header_branch
                %171 = sbr.rel (%p169) target = $region47
              $region44: #{conv3d.1} parent=39 // loop_body
                %v175 = vld [vmem:[%s173] sm:$0xff]
                %176 = vst [vmem:[%s174] sm:$0xff] %v175
                %v177 = vld [vmem:[%s173 + $0x8] sm:$0xff]
                %178 = vst [vmem:[%s174 + $0x8] sm:$0xff] %v177
                %v179 = vld [vmem:[%s173 + $0x10] sm:$0xff]
                %180 = vst [vmem:[%s174 + $0x10] sm:$0xff] %v179
                %v181 = vld [vmem:[%s173 + $0x18] sm:$0xff]
                %182 = vst [vmem:[%s174 + $0x18] sm:$0xff] %v181
                %v183 = vld [vmem:[%s173 + $0x20] sm:$0xff]
                %184 = vst [vmem:[%s174 + $0x20] sm:$0xff] %v183
                %v185 = vld [vmem:[%s173 + $0x28] sm:$0xff]
                %186 = vst [vmem:[%s174 + $0x28] sm:$0xff] %v185
                %v187 = vld [vmem:[%s173 + $0x30] sm:$0xff]
                %188 = vst [vmem:[%s174 + $0x30] sm:$0xff] %v187
                %v189 = vld [vmem:[%s173 + $0x38] sm:$0xff]
                %190 = vst [vmem:[%s174 + $0x38] sm:$0xff] %v189
                %v191 = vld [vmem:[%s173 + $0x40] sm:$0xff]
                %192 = vst [vmem:[%s174 + $0x40] sm:$0xff] %v191
                %v193 = vld [vmem:[%s173 + $0x48] sm:$0xff]
                %194 = vst [vmem:[%s174 + $0x48] sm:$0xff] %v193
                %v195 = vld [vmem:[%s173 + $0x50] sm:$0xff]
                %196 = vst [vmem:[%s174 + $0x50] sm:$0xff] %v195
                %v197 = vld [vmem:[%s173 + $0x58] sm:$0xff]
                %198 = vst [vmem:[%s174 + $0x58] sm:$0xff] %v197
                %v199 = vld [vmem:[%s173 + $0x60] sm:$0xff]
                %200 = vst [vmem:[%s174 + $0x60] sm:$0xff] %v199
                %v201 = vld [vmem:[%s173 + $0x68] sm:$0xff]
                %202 = vst [vmem:[%s174 + $0x68] sm:$0xff] %v201
                %v203 = vld [vmem:[%s173 + $0x70] sm:$0xff]
                %204 = vst [vmem:[%s174 + $0x70] sm:$0xff] %v203
                %v205 = vld [vmem:[%s173 + $0x78] sm:$0xff]
                %206 = vst [vmem:[%s174 + $0x78] sm:$0xff] %v205
                %v207 = vld [vmem:[%s173 + $0x80] sm:$0xff]
                %208 = vst [vmem:[%s174 + $0x80] sm:$0xff] %v207
                %v209 = vld [vmem:[%s173 + $0x88] sm:$0xff]
                %210 = vst [vmem:[%s174 + $0x88] sm:$0xff] %v209
                %v211 = vld [vmem:[%s173 + $0x90] sm:$0xff]
                %212 = vst [vmem:[%s174 + $0x90] sm:$0xff] %v211
                %v213 = vld [vmem:[%s173 + $0x98] sm:$0xff]
                %214 = vst [vmem:[%s174 + $0x98] sm:$0xff] %v213
                %v215 = vld [vmem:[%s173 + $0xa0] sm:$0xff]
                %216 = vst [vmem:[%s174 + $0xa0] sm:$0xff] %v215
                %v217 = vld [vmem:[%s173 + $0xa8] sm:$0xff]
                %218 = vst [vmem:[%s174 + $0xa8] sm:$0xff] %v217
                %v219 = vld [vmem:[%s173 + $0xb0] sm:$0xff]
                %220 = vst [vmem:[%s174 + $0xb0] sm:$0xff] %v219
                %v221 = vld [vmem:[%s173 + $0xb8] sm:$0xff]
                %222 = vst [vmem:[%s174 + $0xb8] sm:$0xff] %v221
                %v223 = vld [vmem:[%s173 + $0xc0] sm:$0xff]
                %224 = vst [vmem:[%s174 + $0xc0] sm:$0xff] %v223
                %v225 = vld [vmem:[%s173 + $0xc8] sm:$0xff]
                %226 = vst [vmem:[%s174 + $0xc8] sm:$0xff] %v225
                %v227 = vld [vmem:[%s173 + $0xd0] sm:$0xff]
                %228 = vst [vmem:[%s174 + $0xd0] sm:$0xff] %v227
                %v229 = vld [vmem:[%s173 + $0xd8] sm:$0xff]
                %230 = vst [vmem:[%s174 + $0xd8] sm:$0xff] %v229
                %v231 = vld [vmem:[%s173 + $0xe0] sm:$0xff]
                %232 = vst [vmem:[%s174 + $0xe0] sm:$0xff] %v231
                %v233 = vld [vmem:[%s173 + $0xe8] sm:$0xff]
                %234 = vst [vmem:[%s174 + $0xe8] sm:$0xff] %v233
                %v235 = vld [vmem:[%s173 + $0xf0] sm:$0xff]
                %236 = vst [vmem:[%s174 + $0xf0] sm:$0xff] %v235
                %v237 = vld [vmem:[%s173 + $0xf8] sm:$0xff]
                %238 = vst [vmem:[%s174 + $0xf8] sm:$0xff] %v237
                %v239 = vld [vmem:[%s173 + $0xe00] sm:$0xff]
                %240 = vst [vmem:[%s174 + $0x100] sm:$0xff] %v239
                %v241 = vld [vmem:[%s173 + $0xe08] sm:$0xff]
                %242 = vst [vmem:[%s174 + $0x108] sm:$0xff] %v241
                %v243 = vld [vmem:[%s173 + $0xe10] sm:$0xff]
                %244 = vst [vmem:[%s174 + $0x110] sm:$0xff] %v243
                %v245 = vld [vmem:[%s173 + $0xe18] sm:$0xff]
                %246 = vst [vmem:[%s174 + $0x118] sm:$0xff] %v245
                %v247 = vld [vmem:[%s173 + $0xe20] sm:$0xff]
                %248 = vst [vmem:[%s174 + $0x120] sm:$0xff] %v247
                %v249 = vld [vmem:[%s173 + $0xe28] sm:$0xff]
                %250 = vst [vmem:[%s174 + $0x128] sm:$0xff] %v249
                %v251 = vld [vmem:[%s173 + $0xe30] sm:$0xff]
                %252 = vst [vmem:[%s174 + $0x130] sm:$0xff] %v251
                %v253 = vld [vmem:[%s173 + $0xe38] sm:$0xff]
                %254 = vst [vmem:[%s174 + $0x138] sm:$0xff] %v253
                %v255 = vld [vmem:[%s173 + $0xe40] sm:$0xff]
                %256 = vst [vmem:[%s174 + $0x140] sm:$0xff] %v255
                %v257 = vld [vmem:[%s173 + $0xe48] sm:$0xff]
                %258 = vst [vmem:[%s174 + $0x148] sm:$0xff] %v257
                %v259 = vld [vmem:[%s173 + $0xe50] sm:$0xff]
                %260 = vst [vmem:[%s174 + $0x150] sm:$0xff] %v259
                %v261 = vld [vmem:[%s173 + $0xe58] sm:$0xff]
                %262 = vst [vmem:[%s174 + $0x158] sm:$0xff] %v261
                %v263 = vld [vmem:[%s173 + $0xe60] sm:$0xff]
                %264 = vst [vmem:[%s174 + $0x160] sm:$0xff] %v263
                %v265 = vld [vmem:[%s173 + $0xe68] sm:$0xff]
                %266 = vst [vmem:[%s174 + $0x168] sm:$0xff] %v265
                %v267 = vld [vmem:[%s173 + $0xe70] sm:$0xff]
                %268 = vst [vmem:[%s174 + $0x170] sm:$0xff] %v267
                %v269 = vld [vmem:[%s173 + $0xe78] sm:$0xff]
                %270 = vst [vmem:[%s174 + $0x178] sm:$0xff] %v269
                %v271 = vld [vmem:[%s173 + $0xe80] sm:$0xff]
                %272 = vst [vmem:[%s174 + $0x180] sm:$0xff] %v271
                %v273 = vld [vmem:[%s173 + $0xe88] sm:$0xff]
                %274 = vst [vmem:[%s174 + $0x188] sm:$0xff] %v273
                %v275 = vld [vmem:[%s173 + $0xe90] sm:$0xff]
                %276 = vst [vmem:[%s174 + $0x190] sm:$0xff] %v275
                %v277 = vld [vmem:[%s173 + $0xe98] sm:$0xff]
                %278 = vst [vmem:[%s174 + $0x198] sm:$0xff] %v277
                %v279 = vld [vmem:[%s173 + $0xea0] sm:$0xff]
                %280 = vst [vmem:[%s174 + $0x1a0] sm:$0xff] %v279
                %v281 = vld [vmem:[%s173 + $0xea8] sm:$0xff]
                %282 = vst [vmem:[%s174 + $0x1a8] sm:$0xff] %v281
                %v283 = vld [vmem:[%s173 + $0xeb0] sm:$0xff]
                %284 = vst [vmem:[%s174 + $0x1b0] sm:$0xff] %v283
                %v285 = vld [vmem:[%s173 + $0xeb8] sm:$0xff]
                %286 = vst [vmem:[%s174 + $0x1b8] sm:$0xff] %v285
                %v287 = vld [vmem:[%s173 + $0xec0] sm:$0xff]
                %288 = vst [vmem:[%s174 + $0x1c0] sm:$0xff] %v287
                %v289 = vld [vmem:[%s173 + $0xec8] sm:$0xff]
                %290 = vst [vmem:[%s174 + $0x1c8] sm:$0xff] %v289
                %v291 = vld [vmem:[%s173 + $0xed0] sm:$0xff]
                %292 = vst [vmem:[%s174 + $0x1d0] sm:$0xff] %v291
                %v293 = vld [vmem:[%s173 + $0xed8] sm:$0xff]
                %294 = vst [vmem:[%s174 + $0x1d8] sm:$0xff] %v293
                %v295 = vld [vmem:[%s173 + $0xee0] sm:$0xff]
                %296 = vst [vmem:[%s174 + $0x1e0] sm:$0xff] %v295
                %v297 = vld [vmem:[%s173 + $0xee8] sm:$0xff]
                %298 = vst [vmem:[%s174 + $0x1e8] sm:$0xff] %v297
                %v299 = vld [vmem:[%s173 + $0xef0] sm:$0xff]
                %300 = vst [vmem:[%s174 + $0x1f0] sm:$0xff] %v299
                %v301 = vld [vmem:[%s173 + $0xef8] sm:$0xff]
                %302 = vst [vmem:[%s174 + $0x1f8] sm:$0xff] %v301
                %v303 = vld [vmem:[%s173 + $0x1c00] sm:$0xff]
                %304 = vst [vmem:[%s174 + $0x200] sm:$0xff] %v303
                %v305 = vld [vmem:[%s173 + $0x1c08] sm:$0xff]
                %306 = vst [vmem:[%s174 + $0x208] sm:$0xff] %v305
                %v307 = vld [vmem:[%s173 + $0x1c10] sm:$0xff]
                %308 = vst [vmem:[%s174 + $0x210] sm:$0xff] %v307
                %v309 = vld [vmem:[%s173 + $0x1c18] sm:$0xff]
                %310 = vst [vmem:[%s174 + $0x218] sm:$0xff] %v309
                %v311 = vld [vmem:[%s173 + $0x1c20] sm:$0xff]
                %312 = vst [vmem:[%s174 + $0x220] sm:$0xff] %v311
                %v313 = vld [vmem:[%s173 + $0x1c28] sm:$0xff]
                %314 = vst [vmem:[%s174 + $0x228] sm:$0xff] %v313
                %v315 = vld [vmem:[%s173 + $0x1c30] sm:$0xff]
                %316 = vst [vmem:[%s174 + $0x230] sm:$0xff] %v315
                %v317 = vld [vmem:[%s173 + $0x1c38] sm:$0xff]
                %318 = vst [vmem:[%s174 + $0x238] sm:$0xff] %v317
                %v319 = vld [vmem:[%s173 + $0x1c40] sm:$0xff]
                %320 = vst [vmem:[%s174 + $0x240] sm:$0xff] %v319
                %v321 = vld [vmem:[%s173 + $0x1c48] sm:$0xff]
                %322 = vst [vmem:[%s174 + $0x248] sm:$0xff] %v321
                %v323 = vld [vmem:[%s173 + $0x1c50] sm:$0xff]
                %324 = vst [vmem:[%s174 + $0x250] sm:$0xff] %v323
                %v325 = vld [vmem:[%s173 + $0x1c58] sm:$0xff]
                %326 = vst [vmem:[%s174 + $0x258] sm:$0xff] %v325
                %v327 = vld [vmem:[%s173 + $0x1c60] sm:$0xff]
                %328 = vst [vmem:[%s174 + $0x260] sm:$0xff] %v327
                %v329 = vld [vmem:[%s173 + $0x1c68] sm:$0xff]
                %330 = vst [vmem:[%s174 + $0x268] sm:$0xff] %v329
                %v331 = vld [vmem:[%s173 + $0x1c70] sm:$0xff]
                %332 = vst [vmem:[%s174 + $0x270] sm:$0xff] %v331
                %v333 = vld [vmem:[%s173 + $0x1c78] sm:$0xff]
                %334 = vst [vmem:[%s174 + $0x278] sm:$0xff] %v333
                %v335 = vld [vmem:[%s173 + $0x1c80] sm:$0xff]
                %336 = vst [vmem:[%s174 + $0x280] sm:$0xff] %v335
                %v337 = vld [vmem:[%s173 + $0x1c88] sm:$0xff]
                %338 = vst [vmem:[%s174 + $0x288] sm:$0xff] %v337
                %v339 = vld [vmem:[%s173 + $0x1c90] sm:$0xff]
                %340 = vst [vmem:[%s174 + $0x290] sm:$0xff] %v339
                %v341 = vld [vmem:[%s173 + $0x1c98] sm:$0xff]
                %342 = vst [vmem:[%s174 + $0x298] sm:$0xff] %v341
                %v343 = vld [vmem:[%s173 + $0x1ca0] sm:$0xff]
                %344 = vst [vmem:[%s174 + $0x2a0] sm:$0xff] %v343
                %v345 = vld [vmem:[%s173 + $0x1ca8] sm:$0xff]
                %346 = vst [vmem:[%s174 + $0x2a8] sm:$0xff] %v345
                %v347 = vld [vmem:[%s173 + $0x1cb0] sm:$0xff]
                %348 = vst [vmem:[%s174 + $0x2b0] sm:$0xff] %v347
                %v349 = vld [vmem:[%s173 + $0x1cb8] sm:$0xff]
                %350 = vst [vmem:[%s174 + $0x2b8] sm:$0xff] %v349
                %v351 = vld [vmem:[%s173 + $0x1cc0] sm:$0xff]
                %352 = vst [vmem:[%s174 + $0x2c0] sm:$0xff] %v351
                %v353 = vld [vmem:[%s173 + $0x1cc8] sm:$0xff]
                %354 = vst [vmem:[%s174 + $0x2c8] sm:$0xff] %v353
                %v355 = vld [vmem:[%s173 + $0x1cd0] sm:$0xff]
                %356 = vst [vmem:[%s174 + $0x2d0] sm:$0xff] %v355
                %v357 = vld [vmem:[%s173 + $0x1cd8] sm:$0xff]
                %358 = vst [vmem:[%s174 + $0x2d8] sm:$0xff] %v357
                %v359 = vld [vmem:[%s173 + $0x1ce0] sm:$0xff]
                %360 = vst [vmem:[%s174 + $0x2e0] sm:$0xff] %v359
                %v361 = vld [vmem:[%s173 + $0x1ce8] sm:$0xff]
                %362 = vst [vmem:[%s174 + $0x2e8] sm:$0xff] %v361
                %v363 = vld [vmem:[%s173 + $0x1cf0] sm:$0xff]
                %364 = vst [vmem:[%s174 + $0x2f0] sm:$0xff] %v363
                %v365 = vld [vmem:[%s173 + $0x1cf8] sm:$0xff]
                %366 = vst [vmem:[%s174 + $0x2f8] sm:$0xff] %v365
                %v367 = vld [vmem:[%s173 + $0x2a00] sm:$0xff]
                %368 = vst [vmem:[%s174 + $0x300] sm:$0xff] %v367
                %v369 = vld [vmem:[%s173 + $0x2a08] sm:$0xff]
                %370 = vst [vmem:[%s174 + $0x308] sm:$0xff] %v369
                %v371 = vld [vmem:[%s173 + $0x2a10] sm:$0xff]
                %372 = vst [vmem:[%s174 + $0x310] sm:$0xff] %v371
                %v373 = vld [vmem:[%s173 + $0x2a18] sm:$0xff]
                %374 = vst [vmem:[%s174 + $0x318] sm:$0xff] %v373
                %v375 = vld [vmem:[%s173 + $0x2a20] sm:$0xff]
                %376 = vst [vmem:[%s174 + $0x320] sm:$0xff] %v375
                %v377 = vld [vmem:[%s173 + $0x2a28] sm:$0xff]
                %378 = vst [vmem:[%s174 + $0x328] sm:$0xff] %v377
                %v379 = vld [vmem:[%s173 + $0x2a30] sm:$0xff]
                %380 = vst [vmem:[%s174 + $0x330] sm:$0xff] %v379
                %v381 = vld [vmem:[%s173 + $0x2a38] sm:$0xff]
                %382 = vst [vmem:[%s174 + $0x338] sm:$0xff] %v381
                %v383 = vld [vmem:[%s173 + $0x2a40] sm:$0xff]
                %384 = vst [vmem:[%s174 + $0x340] sm:$0xff] %v383
                %v385 = vld [vmem:[%s173 + $0x2a48] sm:$0xff]
                %386 = vst [vmem:[%s174 + $0x348] sm:$0xff] %v385
                %v387 = vld [vmem:[%s173 + $0x2a50] sm:$0xff]
                %388 = vst [vmem:[%s174 + $0x350] sm:$0xff] %v387
                %v389 = vld [vmem:[%s173 + $0x2a58] sm:$0xff]
                %390 = vst [vmem:[%s174 + $0x358] sm:$0xff] %v389
                %v391 = vld [vmem:[%s173 + $0x2a60] sm:$0xff]
                %392 = vst [vmem:[%s174 + $0x360] sm:$0xff] %v391
                %v393 = vld [vmem:[%s173 + $0x2a68] sm:$0xff]
                %394 = vst [vmem:[%s174 + $0x368] sm:$0xff] %v393
                %v395 = vld [vmem:[%s173 + $0x2a70] sm:$0xff]
                %396 = vst [vmem:[%s174 + $0x370] sm:$0xff] %v395
                %v397 = vld [vmem:[%s173 + $0x2a78] sm:$0xff]
                %398 = vst [vmem:[%s174 + $0x378] sm:$0xff] %v397
                %v399 = vld [vmem:[%s173 + $0x2a80] sm:$0xff]
                %400 = vst [vmem:[%s174 + $0x380] sm:$0xff] %v399
                %v401 = vld [vmem:[%s173 + $0x2a88] sm:$0xff]
                %402 = vst [vmem:[%s174 + $0x388] sm:$0xff] %v401
                %v403 = vld [vmem:[%s173 + $0x2a90] sm:$0xff]
                %404 = vst [vmem:[%s174 + $0x390] sm:$0xff] %v403
                %v405 = vld [vmem:[%s173 + $0x2a98] sm:$0xff]
                %406 = vst [vmem:[%s174 + $0x398] sm:$0xff] %v405
                %v407 = vld [vmem:[%s173 + $0x2aa0] sm:$0xff]
                %408 = vst [vmem:[%s174 + $0x3a0] sm:$0xff] %v407
                %v409 = vld [vmem:[%s173 + $0x2aa8] sm:$0xff]
                %410 = vst [vmem:[%s174 + $0x3a8] sm:$0xff] %v409
                %v411 = vld [vmem:[%s173 + $0x2ab0] sm:$0xff]
                %412 = vst [vmem:[%s174 + $0x3b0] sm:$0xff] %v411
                %v413 = vld [vmem:[%s173 + $0x2ab8] sm:$0xff]
                %414 = vst [vmem:[%s174 + $0x3b8] sm:$0xff] %v413
                %v415 = vld [vmem:[%s173 + $0x2ac0] sm:$0xff]
                %416 = vst [vmem:[%s174 + $0x3c0] sm:$0xff] %v415
                %v417 = vld [vmem:[%s173 + $0x2ac8] sm:$0xff]
                %418 = vst [vmem:[%s174 + $0x3c8] sm:$0xff] %v417
                %v419 = vld [vmem:[%s173 + $0x2ad0] sm:$0xff]
                %420 = vst [vmem:[%s174 + $0x3d0] sm:$0xff] %v419
                %v421 = vld [vmem:[%s173 + $0x2ad8] sm:$0xff]
                %422 = vst [vmem:[%s174 + $0x3d8] sm:$0xff] %v421
                %v423 = vld [vmem:[%s173 + $0x2ae0] sm:$0xff]
                %424 = vst [vmem:[%s174 + $0x3e0] sm:$0xff] %v423
                %v425 = vld [vmem:[%s173 + $0x2ae8] sm:$0xff]
                %426 = vst [vmem:[%s174 + $0x3e8] sm:$0xff] %v425
                %v427 = vld [vmem:[%s173 + $0x2af0] sm:$0xff]
                %428 = vst [vmem:[%s174 + $0x3f0] sm:$0xff] %v427
                %v429 = vld [vmem:[%s173 + $0x2af8] sm:$0xff]
                %430 = vst [vmem:[%s174 + $0x3f8] sm:$0xff] %v429
              $region45: #{conv3d.1} parent=39 // loop_footer
                %s172 = sadd.s32 1, %s168
              $region46: #{conv3d.1} parent=39 // loop_footer_branch
                %167 = sbr.rel target = $region42
              $region47: #{conv3d.1} parent=39 // loop_exit
                _
            $region40: #{conv3d.1} parent=35 // pred_fallthru
              _
            // Predicated region
            $region48: #{conv3d.1} parent=35 // pred_check
              _
            $region49: #{conv3d.1} parent=35 // pred_check_branch
              %432 = sbr.rel target = $region51
            $region50: #{conv3d.1} parent=35 // pred_region
              _
            $region51: #{conv3d.1} parent=35 // pred_fallthru
              _
          $region36: #{conv3d.1} parent=31 // pred_fallthru
            _
          %433 = vnop
        $region32: #{conv3d.1} parent=27 // pred_fallthru
          _
      $region28: #{conv3d.1} parent=5 // pred_fallthru
        _
      %p434 = scmp.le.s32.totalorder 1, %s10
      %p435 = scmp.lt.s32.totalorder %s10, 15
      %p436 = pnand %p434, %p435
      %p437 = pneg %p436
      // Predicated region
      $region52: #{conv3d.1} parent=5 // pred_check
        _
      $region53: #{conv3d.1} parent=5 // pred_check_branch
        %439 = sbr.rel (%p436) target = $region55
      $region54: #{conv3d.1} parent=5 // pred_region
        %s440 = ssub.s32 %s10, 1
        %s441 = sand.u32 %s44, 1
        %s442 = sand.u32 %s44, 1
        %s443 = smul.addr %s442, 1024
        %s444 = scalar_lea.vmem [#allocation2], %s443
        // Predicated region
        $region56: #{conv3d.1} parent=54 // pred_check
          %p445 = pneg %p57
        $region57: #{conv3d.1} parent=54 // pred_check_branch
          %447 = sbr.rel (%p445) target = $region59
        $region58: #{conv3d.1} parent=54 // pred_region
          _
        $region59: #{conv3d.1} parent=54 // pred_fallthru
          _
        %p448 = pneg %p31
        %p449 = pneg %p28
        %s450 = sand.u32 %s44, 1
        %s451 = sand.u32 %s44, 1
        %s452 = smul.addr %s451, 1024
        %s453 = scalar_lea.vmem [#allocation2], %s452
        %p454 = pneg %p57
        %p455 = pneg %p54
        %p456 = pneg %p78
        %p457 = pneg %p75
        %p458 = pneg %p99
        %p459 = pneg %p96
        %p460 = pneg %p125
        %p461 = pneg %p122
        %s462 = smul.u32 64, %s15
        %p463 = scmp.lt.s32.totalorder %s462, 895
        %s464 = scalar_select %p463, %s462, 895
        %s465 = smul.addr %s464, 8
        %s466 = scalar_lea.vmem %s4, %s465
        %s467 = smul.u32 64, %s15
        %s468 = smul.u32 64, %s15
        %p469 = scmp.lt.s32.totalorder %s468, 895
        %s470 = scalar_select %p469, %s468, 895
        %s471 = smul.addr %s470, 8
        %s472 = scalar_lea.vmem %s4, %s471
        %s473 = smul.u32 64, %s15
        %v475 = vld [vmem:[%s0] sm:$0xf]
        %v476 = vld [vmem:[%s444] sm:$0xff]
        %v477 = vld [vmem:[%s444 + $0x8] sm:$0xff]
        %v478 = vld [vmem:[%s444 + $0x10] sm:$0xff]
        %v479 = vld [vmem:[%s444 + $0x18] sm:$0xff]
        %v480 = vld [vmem:[%s444 + $0x20] sm:$0xff]
        %v481 = vld [vmem:[%s444 + $0x28] sm:$0xff]
        %v482 = vld [vmem:[%s444 + $0x30] sm:$0xff]
        %v483 = vld [vmem:[%s444 + $0x38] sm:$0xff]
        %v484 = vld [vmem:[%s444 + $0x40] sm:$0xff]
        %v485 = vld [vmem:[%s444 + $0x48] sm:$0xff]
        %v486 = vld [vmem:[%s444 + $0x50] sm:$0xff]
        %v487 = vld [vmem:[%s444 + $0x58] sm:$0xff]
        %v488 = vld [vmem:[%s444 + $0x60] sm:$0xff]
        %v489 = vld [vmem:[%s444 + $0x68] sm:$0xff]
        %v490 = vld [vmem:[%s444 + $0x70] sm:$0xff]
        %v491 = vld [vmem:[%s444 + $0x78] sm:$0xff]
        %v492 = vld [vmem:[%s444 + $0x80] sm:$0xff]
        %v493 = vld [vmem:[%s444 + $0x88] sm:$0xff]
        %v494 = vld [vmem:[%s444 + $0x90] sm:$0xff]
        %v495 = vld [vmem:[%s444 + $0x98] sm:$0xff]
        %v496 = vld [vmem:[%s444 + $0xa0] sm:$0xff]
        %v497 = vld [vmem:[%s444 + $0xa8] sm:$0xff]
        %v498 = vld [vmem:[%s444 + $0xb0] sm:$0xff]
        %v499 = vld [vmem:[%s444 + $0xb8] sm:$0xff]
        %v500 = vld [vmem:[%s444 + $0xc0] sm:$0xff]
        %v501 = vld [vmem:[%s444 + $0xc8] sm:$0xff]
        %v502 = vld [vmem:[%s444 + $0xd0] sm:$0xff]
        %v503 = vld [vmem:[%s444 + $0xd8] sm:$0xff]
        %v504 = vld [vmem:[%s444 + $0xe0] sm:$0xff]
        %v505 = vld [vmem:[%s444 + $0xe8] sm:$0xff]
        %v506 = vld [vmem:[%s444 + $0xf0] sm:$0xff]
        %v507 = vld [vmem:[%s444 + $0xf8] sm:$0xff]
        %v508 = vld [vmem:[%s444 + $0x100] sm:$0xff]
        %v509 = vld [vmem:[%s444 + $0x108] sm:$0xff]
        %v510 = vld [vmem:[%s444 + $0x110] sm:$0xff]
        %v511 = vld [vmem:[%s444 + $0x118] sm:$0xff]
        %v512 = vld [vmem:[%s444 + $0x120] sm:$0xff]
        %v513 = vld [vmem:[%s444 + $0x128] sm:$0xff]
        %v514 = vld [vmem:[%s444 + $0x130] sm:$0xff]
        %v515 = vld [vmem:[%s444 + $0x138] sm:$0xff]
        %v516 = vld [vmem:[%s444 + $0x140] sm:$0xff]
        %v517 = vld [vmem:[%s444 + $0x148] sm:$0xff]
        %v518 = vld [vmem:[%s444 + $0x150] sm:$0xff]
        %v519 = vld [vmem:[%s444 + $0x158] sm:$0xff]
        %v520 = vld [vmem:[%s444 + $0x160] sm:$0xff]
        %v521 = vld [vmem:[%s444 + $0x168] sm:$0xff]
        %v522 = vld [vmem:[%s444 + $0x170] sm:$0xff]
        %v523 = vld [vmem:[%s444 + $0x178] sm:$0xff]
        %v524 = vld [vmem:[%s444 + $0x180] sm:$0xff]
        %v525 = vld [vmem:[%s444 + $0x188] sm:$0xff]
        %v526 = vld [vmem:[%s444 + $0x190] sm:$0xff]
        %v527 = vld [vmem:[%s444 + $0x198] sm:$0xff]
        %v528 = vld [vmem:[%s444 + $0x1a0] sm:$0xff]
        %v529 = vld [vmem:[%s444 + $0x1a8] sm:$0xff]
        %v530 = vld [vmem:[%s444 + $0x1b0] sm:$0xff]
        %v531 = vld [vmem:[%s444 + $0x1b8] sm:$0xff]
        %v532 = vld [vmem:[%s444 + $0x1c0] sm:$0xff]
        %v533 = vld [vmem:[%s444 + $0x1c8] sm:$0xff]
        %v534 = vld [vmem:[%s444 + $0x1d0] sm:$0xff]
        %v535 = vld [vmem:[%s444 + $0x1d8] sm:$0xff]
        %v536 = vld [vmem:[%s444 + $0x1e0] sm:$0xff]
        %v537 = vld [vmem:[%s444 + $0x1e8] sm:$0xff]
        %v538 = vld [vmem:[%s444 + $0x1f0] sm:$0xff]
        %v539 = vld [vmem:[%s444 + $0x1f8] sm:$0xff]
        %v540 = vld [vmem:[%s444 + $0x200] sm:$0xff]
        %v541 = vld [vmem:[%s444 + $0x208] sm:$0xff]
        %v542 = vld [vmem:[%s444 + $0x210] sm:$0xff]
        %v543 = vld [vmem:[%s444 + $0x218] sm:$0xff]
        %v544 = vld [vmem:[%s444 + $0x220] sm:$0xff]
        %v545 = vld [vmem:[%s444 + $0x228] sm:$0xff]
        %v546 = vld [vmem:[%s444 + $0x230] sm:$0xff]
        %v547 = vld [vmem:[%s444 + $0x238] sm:$0xff]
        %v548 = vld [vmem:[%s444 + $0x240] sm:$0xff]
        %v549 = vld [vmem:[%s444 + $0x248] sm:$0xff]
        %v550 = vld [vmem:[%s444 + $0x250] sm:$0xff]
        %v551 = vld [vmem:[%s444 + $0x258] sm:$0xff]
        %v552 = vld [vmem:[%s444 + $0x260] sm:$0xff]
        %v553 = vld [vmem:[%s444 + $0x268] sm:$0xff]
        %v554 = vld [vmem:[%s444 + $0x270] sm:$0xff]
        %v555 = vld [vmem:[%s444 + $0x278] sm:$0xff]
        %v556 = vld [vmem:[%s444 + $0x280] sm:$0xff]
        %v557 = vld [vmem:[%s444 + $0x288] sm:$0xff]
        %v558 = vld [vmem:[%s444 + $0x290] sm:$0xff]
        %v559 = vld [vmem:[%s444 + $0x298] sm:$0xff]
        %v560 = vld [vmem:[%s444 + $0x2a0] sm:$0xff]
        %v561 = vld [vmem:[%s444 + $0x2a8] sm:$0xff]
        %v562 = vld [vmem:[%s444 + $0x2b0] sm:$0xff]
        %v563 = vld [vmem:[%s444 + $0x2b8] sm:$0xff]
        %v564 = vld [vmem:[%s444 + $0x2c0] sm:$0xff]
        %v565 = vld [vmem:[%s444 + $0x2c8] sm:$0xff]
        %v566 = vld [vmem:[%s444 + $0x2d0] sm:$0xff]
        %v567 = vld [vmem:[%s444 + $0x2d8] sm:$0xff]
        %v568 = vld [vmem:[%s444 + $0x2e0] sm:$0xff]
        %v569 = vld [vmem:[%s444 + $0x2e8] sm:$0xff]
        %v570 = vld [vmem:[%s444 + $0x2f0] sm:$0xff]
        %v571 = vld [vmem:[%s444 + $0x2f8] sm:$0xff]
        %v572 = vld [vmem:[%s444 + $0x300] sm:$0xff]
        %v573 = vld [vmem:[%s444 + $0x308] sm:$0xff]
        %v574 = vld [vmem:[%s444 + $0x310] sm:$0xff]
        %v575 = vld [vmem:[%s444 + $0x318] sm:$0xff]
        %v576 = vld [vmem:[%s444 + $0x320] sm:$0xff]
        %v577 = vld [vmem:[%s444 + $0x328] sm:$0xff]
        %v578 = vld [vmem:[%s444 + $0x330] sm:$0xff]
        %v579 = vld [vmem:[%s444 + $0x338] sm:$0xff]
        %v580 = vld [vmem:[%s444 + $0x340] sm:$0xff]
        %v581 = vld [vmem:[%s444 + $0x348] sm:$0xff]
        %v582 = vld [vmem:[%s444 + $0x350] sm:$0xff]
        %v583 = vld [vmem:[%s444 + $0x358] sm:$0xff]
        %v584 = vld [vmem:[%s444 + $0x360] sm:$0xff]
        %v585 = vld [vmem:[%s444 + $0x368] sm:$0xff]
        %v586 = vld [vmem:[%s444 + $0x370] sm:$0xff]
        %v587 = vld [vmem:[%s444 + $0x378] sm:$0xff]
        %v588 = vld [vmem:[%s444 + $0x380] sm:$0xff]
        %v589 = vld [vmem:[%s444 + $0x388] sm:$0xff]
        %v590 = vld [vmem:[%s444 + $0x390] sm:$0xff]
        %v591 = vld [vmem:[%s444 + $0x398] sm:$0xff]
        %v592 = vld [vmem:[%s444 + $0x3a0] sm:$0xff]
        %v593 = vld [vmem:[%s444 + $0x3a8] sm:$0xff]
        %v594 = vld [vmem:[%s444 + $0x3b0] sm:$0xff]
        %v595 = vld [vmem:[%s444 + $0x3b8] sm:$0xff]
        %v596 = vld [vmem:[%s444 + $0x3c0] sm:$0xff]
        %v597 = vld [vmem:[%s444 + $0x3c8] sm:$0xff]
        %v598 = vld [vmem:[%s444 + $0x3d0] sm:$0xff]
        %v599 = vld [vmem:[%s444 + $0x3d8] sm:$0xff]
        %v600 = vld [vmem:[%s444 + $0x3e0] sm:$0xff]
        %v601 = vld [vmem:[%s444 + $0x3e8] sm:$0xff]
        %v602 = vld [vmem:[%s444 + $0x3f0] sm:$0xff]
        %v603 = vld [vmem:[%s444 + $0x3f8] sm:$0xff]
        %v732 = vunpack.c.l.b16 %v476
        %v733 = vunpack.c.h.b16 %v476
        %v734 = vunpack.c.l.b16 %v477
        %v735 = vunpack.c.h.b16 %v477
        %v736 = vunpack.c.l.b16 %v478
        %v737 = vunpack.c.h.b16 %v478
        %v738 = vunpack.c.l.b16 %v479
        %v739 = vunpack.c.h.b16 %v479
        %v740 = vunpack.c.l.b16 %v480
        %v741 = vunpack.c.h.b16 %v480
        %v742 = vunpack.c.l.b16 %v481
        %v743 = vunpack.c.h.b16 %v481
        %v744 = vunpack.c.l.b16 %v482
        %v745 = vunpack.c.h.b16 %v482
        %v746 = vunpack.c.l.b16 %v483
        %v747 = vunpack.c.h.b16 %v483
        %v748 = vunpack.c.l.b16 %v484
        %v749 = vunpack.c.h.b16 %v484
        %v750 = vunpack.c.l.b16 %v485
        %v751 = vunpack.c.h.b16 %v485
        %v752 = vunpack.c.l.b16 %v486
        %v753 = vunpack.c.h.b16 %v486
        %v754 = vunpack.c.l.b16 %v487
        %v755 = vunpack.c.h.b16 %v487
        %v756 = vunpack.c.l.b16 %v488
        %v757 = vunpack.c.h.b16 %v488
        %v758 = vunpack.c.l.b16 %v489
        %v759 = vunpack.c.h.b16 %v489
        %v760 = vunpack.c.l.b16 %v490
        %v761 = vunpack.c.h.b16 %v490
        %v762 = vunpack.c.l.b16 %v491
        %v763 = vunpack.c.h.b16 %v491
        %v764 = vunpack.c.l.b16 %v492
        %v765 = vunpack.c.h.b16 %v492
        %v766 = vunpack.c.l.b16 %v493
        %v767 = vunpack.c.h.b16 %v493
        %v768 = vunpack.c.l.b16 %v494
        %v769 = vunpack.c.h.b16 %v494
        %v770 = vunpack.c.l.b16 %v495
        %v771 = vunpack.c.h.b16 %v495
        %v772 = vunpack.c.l.b16 %v496
        %v773 = vunpack.c.h.b16 %v496
        %v774 = vunpack.c.l.b16 %v497
        %v775 = vunpack.c.h.b16 %v497
        %v776 = vunpack.c.l.b16 %v498
        %v777 = vunpack.c.h.b16 %v498
        %v778 = vunpack.c.l.b16 %v499
        %v779 = vunpack.c.h.b16 %v499
        %v780 = vunpack.c.l.b16 %v500
        %v781 = vunpack.c.h.b16 %v500
        %v782 = vunpack.c.l.b16 %v501
        %v783 = vunpack.c.h.b16 %v501
        %v784 = vunpack.c.l.b16 %v502
        %v785 = vunpack.c.h.b16 %v502
        %v786 = vunpack.c.l.b16 %v503
        %v787 = vunpack.c.h.b16 %v503
        %v788 = vunpack.c.l.b16 %v504
        %v789 = vunpack.c.h.b16 %v504
        %v790 = vunpack.c.l.b16 %v505
        %v791 = vunpack.c.h.b16 %v505
        %v792 = vunpack.c.l.b16 %v506
        %v793 = vunpack.c.h.b16 %v506
        %v794 = vunpack.c.l.b16 %v507
        %v795 = vunpack.c.h.b16 %v507
        %v796 = vunpack.c.l.b16 %v508
        %v797 = vunpack.c.h.b16 %v508
        %v798 = vunpack.c.l.b16 %v509
        %v799 = vunpack.c.h.b16 %v509
        %v800 = vunpack.c.l.b16 %v510
        %v801 = vunpack.c.h.b16 %v510
        %v802 = vunpack.c.l.b16 %v511
        %v803 = vunpack.c.h.b16 %v511
        %v804 = vunpack.c.l.b16 %v512
        %v805 = vunpack.c.h.b16 %v512
        %v806 = vunpack.c.l.b16 %v513
        %v807 = vunpack.c.h.b16 %v513
        %v808 = vunpack.c.l.b16 %v514
        %v809 = vunpack.c.h.b16 %v514
        %v810 = vunpack.c.l.b16 %v515
        %v811 = vunpack.c.h.b16 %v515
        %v812 = vunpack.c.l.b16 %v516
        %v813 = vunpack.c.h.b16 %v516
        %v814 = vunpack.c.l.b16 %v517
        %v815 = vunpack.c.h.b16 %v517
        %v816 = vunpack.c.l.b16 %v518
        %v817 = vunpack.c.h.b16 %v518
        %v818 = vunpack.c.l.b16 %v519
        %v819 = vunpack.c.h.b16 %v519
        %v820 = vunpack.c.l.b16 %v520
        %v821 = vunpack.c.h.b16 %v520
        %v822 = vunpack.c.l.b16 %v521
        %v823 = vunpack.c.h.b16 %v521
        %v824 = vunpack.c.l.b16 %v522
        %v825 = vunpack.c.h.b16 %v522
        %v826 = vunpack.c.l.b16 %v523
        %v827 = vunpack.c.h.b16 %v523
        %v828 = vunpack.c.l.b16 %v524
        %v829 = vunpack.c.h.b16 %v524
        %v830 = vunpack.c.l.b16 %v525
        %v831 = vunpack.c.h.b16 %v525
        %v832 = vunpack.c.l.b16 %v526
        %v833 = vunpack.c.h.b16 %v526
        %v834 = vunpack.c.l.b16 %v527
        %v835 = vunpack.c.h.b16 %v527
        %v836 = vunpack.c.l.b16 %v528
        %v837 = vunpack.c.h.b16 %v528
        %v838 = vunpack.c.l.b16 %v529
        %v839 = vunpack.c.h.b16 %v529
        %v840 = vunpack.c.l.b16 %v530
        %v841 = vunpack.c.h.b16 %v530
        %v842 = vunpack.c.l.b16 %v531
        %v843 = vunpack.c.h.b16 %v531
        %v844 = vunpack.c.l.b16 %v532
        %v845 = vunpack.c.h.b16 %v532
        %v846 = vunpack.c.l.b16 %v533
        %v847 = vunpack.c.h.b16 %v533
        %v848 = vunpack.c.l.b16 %v534
        %v849 = vunpack.c.h.b16 %v534
        %v850 = vunpack.c.l.b16 %v535
        %v851 = vunpack.c.h.b16 %v535
        %v852 = vunpack.c.l.b16 %v536
        %v853 = vunpack.c.h.b16 %v536
        %v854 = vunpack.c.l.b16 %v537
        %v855 = vunpack.c.h.b16 %v537
        %v856 = vunpack.c.l.b16 %v538
        %v857 = vunpack.c.h.b16 %v538
        %v858 = vunpack.c.l.b16 %v539
        %v859 = vunpack.c.h.b16 %v539
        %v860 = vunpack.c.l.b16 %v540
        %v861 = vunpack.c.h.b16 %v540
        %v862 = vunpack.c.l.b16 %v541
        %v863 = vunpack.c.h.b16 %v541
        %v864 = vunpack.c.l.b16 %v542
        %v865 = vunpack.c.h.b16 %v542
        %v866 = vunpack.c.l.b16 %v543
        %v867 = vunpack.c.h.b16 %v543
        %v868 = vunpack.c.l.b16 %v544
        %v869 = vunpack.c.h.b16 %v544
        %v870 = vunpack.c.l.b16 %v545
        %v871 = vunpack.c.h.b16 %v545
        %v872 = vunpack.c.l.b16 %v546
        %v873 = vunpack.c.h.b16 %v546
        %v874 = vunpack.c.l.b16 %v547
        %v875 = vunpack.c.h.b16 %v547
        %v876 = vunpack.c.l.b16 %v548
        %v877 = vunpack.c.h.b16 %v548
        %v878 = vunpack.c.l.b16 %v549
        %v879 = vunpack.c.h.b16 %v549
        %v880 = vunpack.c.l.b16 %v550
        %v881 = vunpack.c.h.b16 %v550
        %v882 = vunpack.c.l.b16 %v551
        %v883 = vunpack.c.h.b16 %v551
        %v884 = vunpack.c.l.b16 %v552
        %v885 = vunpack.c.h.b16 %v552
        %v886 = vunpack.c.l.b16 %v553
        %v887 = vunpack.c.h.b16 %v553
        %v888 = vunpack.c.l.b16 %v554
        %v889 = vunpack.c.h.b16 %v554
        %v890 = vunpack.c.l.b16 %v555
        %v891 = vunpack.c.h.b16 %v555
        %v892 = vunpack.c.l.b16 %v556
        %v893 = vunpack.c.h.b16 %v556
        %v894 = vunpack.c.l.b16 %v557
        %v895 = vunpack.c.h.b16 %v557
        %v896 = vunpack.c.l.b16 %v558
        %v897 = vunpack.c.h.b16 %v558
        %v898 = vunpack.c.l.b16 %v559
        %v899 = vunpack.c.h.b16 %v559
        %v900 = vunpack.c.l.b16 %v560
        %v901 = vunpack.c.h.b16 %v560
        %v902 = vunpack.c.l.b16 %v561
        %v903 = vunpack.c.h.b16 %v561
        %v904 = vunpack.c.l.b16 %v562
        %v905 = vunpack.c.h.b16 %v562
        %v906 = vunpack.c.l.b16 %v563
        %v907 = vunpack.c.h.b16 %v563
        %v908 = vunpack.c.l.b16 %v564
        %v909 = vunpack.c.h.b16 %v564
        %v910 = vunpack.c.l.b16 %v565
        %v911 = vunpack.c.h.b16 %v565
        %v912 = vunpack.c.l.b16 %v566
        %v913 = vunpack.c.h.b16 %v566
        %v914 = vunpack.c.l.b16 %v567
        %v915 = vunpack.c.h.b16 %v567
        %v916 = vunpack.c.l.b16 %v568
        %v917 = vunpack.c.h.b16 %v568
        %v918 = vunpack.c.l.b16 %v569
        %v919 = vunpack.c.h.b16 %v569
        %v920 = vunpack.c.l.b16 %v570
        %v921 = vunpack.c.h.b16 %v570
        %v922 = vunpack.c.l.b16 %v571
        %v923 = vunpack.c.h.b16 %v571
        %v924 = vunpack.c.l.b16 %v572
        %v925 = vunpack.c.h.b16 %v572
        %v926 = vunpack.c.l.b16 %v573
        %v927 = vunpack.c.h.b16 %v573
        %v928 = vunpack.c.l.b16 %v574
        %v929 = vunpack.c.h.b16 %v574
        %v930 = vunpack.c.l.b16 %v575
        %v931 = vunpack.c.h.b16 %v575
        %v932 = vunpack.c.l.b16 %v576
        %v933 = vunpack.c.h.b16 %v576
        %v934 = vunpack.c.l.b16 %v577
        %v935 = vunpack.c.h.b16 %v577
        %v936 = vunpack.c.l.b16 %v578
        %v937 = vunpack.c.h.b16 %v578
        %v938 = vunpack.c.l.b16 %v579
        %v939 = vunpack.c.h.b16 %v579
        %v940 = vunpack.c.l.b16 %v580
        %v941 = vunpack.c.h.b16 %v580
        %v942 = vunpack.c.l.b16 %v581
        %v943 = vunpack.c.h.b16 %v581
        %v944 = vunpack.c.l.b16 %v582
        %v945 = vunpack.c.h.b16 %v582
        %v946 = vunpack.c.l.b16 %v583
        %v947 = vunpack.c.h.b16 %v583
        %v948 = vunpack.c.l.b16 %v584
        %v949 = vunpack.c.h.b16 %v584
        %v950 = vunpack.c.l.b16 %v585
        %v951 = vunpack.c.h.b16 %v585
        %v952 = vunpack.c.l.b16 %v586
        %v953 = vunpack.c.h.b16 %v586
        %v954 = vunpack.c.l.b16 %v587
        %v955 = vunpack.c.h.b16 %v587
        %v956 = vunpack.c.l.b16 %v588
        %v957 = vunpack.c.h.b16 %v588
        %v958 = vunpack.c.l.b16 %v589
        %v959 = vunpack.c.h.b16 %v589
        %v960 = vunpack.c.l.b16 %v590
        %v961 = vunpack.c.h.b16 %v590
        %v962 = vunpack.c.l.b16 %v591
        %v963 = vunpack.c.h.b16 %v591
        %v964 = vunpack.c.l.b16 %v592
        %v965 = vunpack.c.h.b16 %v592
        %v966 = vunpack.c.l.b16 %v593
        %v967 = vunpack.c.h.b16 %v593
        %v968 = vunpack.c.l.b16 %v594
        %v969 = vunpack.c.h.b16 %v594
        %v970 = vunpack.c.l.b16 %v595
        %v971 = vunpack.c.h.b16 %v595
        %v972 = vunpack.c.l.b16 %v596
        %v973 = vunpack.c.h.b16 %v596
        %v974 = vunpack.c.l.b16 %v597
        %v975 = vunpack.c.h.b16 %v597
        %v976 = vunpack.c.l.b16 %v598
        %v977 = vunpack.c.h.b16 %v598
        %v978 = vunpack.c.l.b16 %v599
        %v979 = vunpack.c.h.b16 %v599
        %v980 = vunpack.c.l.b16 %v600
        %v981 = vunpack.c.h.b16 %v600
        %v982 = vunpack.c.l.b16 %v601
        %v983 = vunpack.c.h.b16 %v601
        %v984 = vunpack.c.l.b16 %v602
        %v985 = vunpack.c.h.b16 %v602
        %v986 = vunpack.c.l.b16 %v603
        %v987 = vunpack.c.h.b16 %v603
        %v988 = vpack.c.b16 %v796, %v732
        %v989 = vpack.c.b16 %v797, %v733
        %v990 = vpack.c.b16 %v798, %v734
        %v991 = vpack.c.b16 %v799, %v735
        %v992 = vpack.c.b16 %v800, %v736
        %v993 = vpack.c.b16 %v801, %v737
        %v994 = vpack.c.b16 %v802, %v738
        %v995 = vpack.c.b16 %v803, %v739
        %v996 = vpack.c.b16 %v804, %v740
        %v997 = vpack.c.b16 %v805, %v741
        %v998 = vpack.c.b16 %v806, %v742
        %v999 = vpack.c.b16 %v807, %v743
        %v1000 = vpack.c.b16 %v808, %v744
        %v1001 = vpack.c.b16 %v809, %v745
        %v1002 = vpack.c.b16 %v810, %v746
        %v1003 = vpack.c.b16 %v811, %v747
        %v1004 = vpack.c.b16 %v812, %v748
        %v1005 = vpack.c.b16 %v813, %v749
        %v1006 = vpack.c.b16 %v814, %v750
        %v1007 = vpack.c.b16 %v815, %v751
        %v1008 = vpack.c.b16 %v816, %v752
        %v1009 = vpack.c.b16 %v817, %v753
        %v1010 = vpack.c.b16 %v818, %v754
        %v1011 = vpack.c.b16 %v819, %v755
        %v1012 = vpack.c.b16 %v820, %v756
        %v1013 = vpack.c.b16 %v821, %v757
        %v1014 = vpack.c.b16 %v822, %v758
        %v1015 = vpack.c.b16 %v823, %v759
        %v1016 = vpack.c.b16 %v824, %v760
        %v1017 = vpack.c.b16 %v825, %v761
        %v1018 = vpack.c.b16 %v826, %v762
        %v1019 = vpack.c.b16 %v827, %v763
        %v1020 = vpack.c.b16 %v828, %v764
        %v1021 = vpack.c.b16 %v829, %v765
        %v1022 = vpack.c.b16 %v830, %v766
        %v1023 = vpack.c.b16 %v831, %v767
        %v1024 = vpack.c.b16 %v832, %v768
        %v1025 = vpack.c.b16 %v833, %v769
        %v1026 = vpack.c.b16 %v834, %v770
        %v1027 = vpack.c.b16 %v835, %v771
        %v1028 = vpack.c.b16 %v836, %v772
        %v1029 = vpack.c.b16 %v837, %v773
        %v1030 = vpack.c.b16 %v838, %v774
        %v1031 = vpack.c.b16 %v839, %v775
        %v1032 = vpack.c.b16 %v840, %v776
        %v1033 = vpack.c.b16 %v841, %v777
        %v1034 = vpack.c.b16 %v842, %v778
        %v1035 = vpack.c.b16 %v843, %v779
        %v1036 = vpack.c.b16 %v844, %v780
        %v1037 = vpack.c.b16 %v845, %v781
        %v1038 = vpack.c.b16 %v846, %v782
        %v1039 = vpack.c.b16 %v847, %v783
        %v1040 = vpack.c.b16 %v848, %v784
        %v1041 = vpack.c.b16 %v849, %v785
        %v1042 = vpack.c.b16 %v850, %v786
        %v1043 = vpack.c.b16 %v851, %v787
        %v1044 = vpack.c.b16 %v852, %v788
        %v1045 = vpack.c.b16 %v853, %v789
        %v1046 = vpack.c.b16 %v854, %v790
        %v1047 = vpack.c.b16 %v855, %v791
        %v1048 = vpack.c.b16 %v856, %v792
        %v1049 = vpack.c.b16 %v857, %v793
        %v1050 = vpack.c.b16 %v858, %v794
        %v1051 = vpack.c.b16 %v859, %v795
        %v1052 = vpack.c.b16 %v924, %v860
        %v1053 = vpack.c.b16 %v925, %v861
        %v1054 = vpack.c.b16 %v926, %v862
        %v1055 = vpack.c.b16 %v927, %v863
        %v1056 = vpack.c.b16 %v928, %v864
        %v1057 = vpack.c.b16 %v929, %v865
        %v1058 = vpack.c.b16 %v930, %v866
        %v1059 = vpack.c.b16 %v931, %v867
        %v1060 = vpack.c.b16 %v932, %v868
        %v1061 = vpack.c.b16 %v933, %v869
        %v1062 = vpack.c.b16 %v934, %v870
        %v1063 = vpack.c.b16 %v935, %v871
        %v1064 = vpack.c.b16 %v936, %v872
        %v1065 = vpack.c.b16 %v937, %v873
        %v1066 = vpack.c.b16 %v938, %v874
        %v1067 = vpack.c.b16 %v939, %v875
        %v1068 = vpack.c.b16 %v940, %v876
        %v1069 = vpack.c.b16 %v941, %v877
        %v1070 = vpack.c.b16 %v942, %v878
        %v1071 = vpack.c.b16 %v943, %v879
        %v1072 = vpack.c.b16 %v944, %v880
        %v1073 = vpack.c.b16 %v945, %v881
        %v1074 = vpack.c.b16 %v946, %v882
        %v1075 = vpack.c.b16 %v947, %v883
        %v1076 = vpack.c.b16 %v948, %v884
        %v1077 = vpack.c.b16 %v949, %v885
        %v1078 = vpack.c.b16 %v950, %v886
        %v1079 = vpack.c.b16 %v951, %v887
        %v1080 = vpack.c.b16 %v952, %v888
        %v1081 = vpack.c.b16 %v953, %v889
        %v1082 = vpack.c.b16 %v954, %v890
        %v1083 = vpack.c.b16 %v955, %v891
        %v1084 = vpack.c.b16 %v956, %v892
        %v1085 = vpack.c.b16 %v957, %v893
        %v1086 = vpack.c.b16 %v958, %v894
        %v1087 = vpack.c.b16 %v959, %v895
        %v1088 = vpack.c.b16 %v960, %v896
        %v1089 = vpack.c.b16 %v961, %v897
        %v1090 = vpack.c.b16 %v962, %v898
        %v1091 = vpack.c.b16 %v963, %v899
        %v1092 = vpack.c.b16 %v964, %v900
        %v1093 = vpack.c.b16 %v965, %v901
        %v1094 = vpack.c.b16 %v966, %v902
        %v1095 = vpack.c.b16 %v967, %v903
        %v1096 = vpack.c.b16 %v968, %v904
        %v1097 = vpack.c.b16 %v969, %v905
        %v1098 = vpack.c.b16 %v970, %v906
        %v1099 = vpack.c.b16 %v971, %v907
        %v1100 = vpack.c.b16 %v972, %v908
        %v1101 = vpack.c.b16 %v973, %v909
        %v1102 = vpack.c.b16 %v974, %v910
        %v1103 = vpack.c.b16 %v975, %v911
        %v1104 = vpack.c.b16 %v976, %v912
        %v1105 = vpack.c.b16 %v977, %v913
        %v1106 = vpack.c.b16 %v978, %v914
        %v1107 = vpack.c.b16 %v979, %v915
        %v1108 = vpack.c.b16 %v980, %v916
        %v1109 = vpack.c.b16 %v981, %v917
        %v1110 = vpack.c.b16 %v982, %v918
        %v1111 = vpack.c.b16 %v983, %v919
        %v1112 = vpack.c.b16 %v984, %v920
        %v1113 = vpack.c.b16 %v985, %v921
        %v1114 = vpack.c.b16 %v986, %v922
        %v1115 = vpack.c.b16 %v987, %v923
        %vm1244 = vcmask 261120
        %v1246 = vsel %vm1244, %v475, 0
        %1248 = vmatpush.bf16.msra.mxu0 0
        %1249 = vmatpush.bf16.msra.mxu0 0
        %1250 = vmatpush.bf16.msra.mxu0 0
        %1251 = vmatpush.bf16.msra.mxu0 0
        %1252 = vmatpush.bf16.msra.mxu0 0
        %1253 = vmatpush.bf16.msra.mxu0 0
        %1254 = vmatpush.bf16.msra.mxu0 %v1052
        %1255 = vmatpush.bf16.msra.mxu0 %v988
        %1256 = vmatmul.bf16.gmra.mxu0 %v1246
        %v1257 = vpop.f32.mrf.mxu0
        %v1258 = vadd.f32 0.0, %v1257
        %v1259 = vpop.f32.mrf.mxu0
        %1260 = vdwg.mxu0
        %1261 = vmatpush.bf16.msra.mxu0 0
        %1262 = vmatpush.bf16.msra.mxu0 0
        %1263 = vmatpush.bf16.msra.mxu0 0
        %1264 = vmatpush.bf16.msra.mxu0 0
        %1265 = vmatpush.bf16.msra.mxu0 0
        %1266 = vmatpush.bf16.msra.mxu0 0
        %1267 = vmatpush.bf16.msra.mxu0 %v1053
        %1268 = vmatpush.bf16.msra.mxu0 %v989
        %1269 = vmatmul.bf16.gmra.mxu0 %v1246
        %v1270 = vpop.f32.mrf.mxu0
        %v1271 = vadd.f32 0.0, %v1270
        %v1272 = vpop.f32.mrf.mxu0
        %1273 = vdwg.mxu0
        %1274 = vmatpush.bf16.msra.mxu0 0
        %1275 = vmatpush.bf16.msra.mxu0 0
        %1276 = vmatpush.bf16.msra.mxu0 0
        %1277 = vmatpush.bf16.msra.mxu0 0
        %1278 = vmatpush.bf16.msra.mxu0 0
        %1279 = vmatpush.bf16.msra.mxu0 0
        %1280 = vmatpush.bf16.msra.mxu0 %v1054
        %1281 = vmatpush.bf16.msra.mxu0 %v990
        %1282 = vmatmul.bf16.gmra.mxu0 %v1246
        %v1283 = vpop.f32.mrf.mxu0
        %v1284 = vadd.f32 0.0, %v1283
        %v1285 = vpop.f32.mrf.mxu0
        %1286 = vdwg.mxu0
        %1287 = vmatpush.bf16.msra.mxu0 0
        %1288 = vmatpush.bf16.msra.mxu0 0
        %1289 = vmatpush.bf16.msra.mxu0 0
        %1290 = vmatpush.bf16.msra.mxu0 0
        %1291 = vmatpush.bf16.msra.mxu0 0
        %1292 = vmatpush.bf16.msra.mxu0 0
        %1293 = vmatpush.bf16.msra.mxu0 %v1055
        %1294 = vmatpush.bf16.msra.mxu0 %v991
        %1295 = vmatmul.bf16.gmra.mxu0 %v1246
        %v1296 = vpop.f32.mrf.mxu0
        %v1297 = vadd.f32 0.0, %v1296
        %v1298 = vpop.f32.mrf.mxu0
        %1299 = vdwg.mxu0
        %1300 = vmatpush.bf16.msra.mxu0 0
        %1301 = vmatpush.bf16.msra.mxu0 0
        %1302 = vmatpush.bf16.msra.mxu0 0
        %1303 = vmatpush.bf16.msra.mxu0 0
        %1304 = vmatpush.bf16.msra.mxu0 0
        %1305 = vmatpush.bf16.msra.mxu0 0
        %1306 = vmatpush.bf16.msra.mxu0 %v1056
        %1307 = vmatpush.bf16.msra.mxu0 %v992
        %1308 = vmatmul.bf16.gmra.mxu0 %v1246
        %v1309 = vpop.f32.mrf.mxu0
        %v1310 = vadd.f32 0.0, %v1309
        %v1311 = vpop.f32.mrf.mxu0
        %1312 = vdwg.mxu0
        %1313 = vmatpush.bf16.msra.mxu0 0
        %1314 = vmatpush.bf16.msra.mxu0 0
        %1315 = vmatpush.bf16.msra.mxu0 0
        %1316 = vmatpush.bf16.msra.mxu0 0
        %1317 = vmatpush.bf16.msra.mxu0 0
        %1318 = vmatpush.bf16.msra.mxu0 0
        %1319 = vmatpush.bf16.msra.mxu0 %v1057
        %1320 = vmatpush.bf16.msra.mxu0 %v993
        %1321 = vmatmul.bf16.gmra.mxu0 %v1246
        %v1322 = vpop.f32.mrf.mxu0
        %v1323 = vadd.f32 0.0, %v1322
        %v1324 = vpop.f32.mrf.mxu0
        %1325 = vdwg.mxu0
        %1326 = vmatpush.bf16.msra.mxu0 0
        %1327 = vmatpush.bf16.msra.mxu0 0
        %1328 = vmatpush.bf16.msra.mxu0 0
        %1329 = vmatpush.bf16.msra.mxu0 0
        %1330 = vmatpush.bf16.msra.mxu0 0
        %1331 = vmatpush.bf16.msra.mxu0 0
        %1332 = vmatpush.bf16.msra.mxu0 %v1058
        %1333 = vmatpush.bf16.msra.mxu0 %v994
        %1334 = vmatmul.bf16.gmra.mxu0 %v1246
        %v1335 = vpop.f32.mrf.mxu0
        %v1336 = vadd.f32 0.0, %v1335
        %v1337 = vpop.f32.mrf.mxu0
        %1338 = vdwg.mxu0
        %1339 = vmatpush.bf16.msra.mxu0 0
        %1340 = vmatpush.bf16.msra.mxu0 0
        %1341 = vmatpush.bf16.msra.mxu0 0
        %1342 = vmatpush.bf16.msra.mxu0 0
        %1343 = vmatpush.bf16.msra.mxu0 0
        %1344 = vmatpush.bf16.msra.mxu0 0
        %1345 = vmatpush.bf16.msra.mxu0 %v1059
        %1346 = vmatpush.bf16.msra.mxu0 %v995
        %1347 = vmatmul.bf16.gmra.mxu0 %v1246
        %v1348 = vpop.f32.mrf.mxu0
        %v1349 = vadd.f32 0.0, %v1348
        %v1350 = vpop.f32.mrf.mxu0
        %1351 = vdwg.mxu0
        %1352 = vmatpush.bf16.msra.mxu0 0
        %1353 = vmatpush.bf16.msra.mxu0 0
        %1354 = vmatpush.bf16.msra.mxu0 0
        %1355 = vmatpush.bf16.msra.mxu0 0
        %1356 = vmatpush.bf16.msra.mxu0 0
        %1357 = vmatpush.bf16.msra.mxu0 0
        %1358 = vmatpush.bf16.msra.mxu0 %v1060
        %1359 = vmatpush.bf16.msra.mxu0 %v996
        %1360 = vmatmul.bf16.gmra.mxu0 %v1246
        %v1361 = vpop.f32.mrf.mxu0
        %v1362 = vadd.f32 0.0, %v1361
        %v1363 = vpop.f32.mrf.mxu0
        %1364 = vdwg.mxu0
        %1365 = vmatpush.bf16.msra.mxu0 0
        %1366 = vmatpush.bf16.msra.mxu0 0
        %1367 = vmatpush.bf16.msra.mxu0 0
        %1368 = vmatpush.bf16.msra.mxu0 0
        %1369 = vmatpush.bf16.msra.mxu0 0
        %1370 = vmatpush.bf16.msra.mxu0 0
        %1371 = vmatpush.bf16.msra.mxu0 %v1061
        %1372 = vmatpush.bf16.msra.mxu0 %v997
        %1373 = vmatmul.bf16.gmra.mxu0 %v1246
        %v1374 = vpop.f32.mrf.mxu0
        %v1375 = vadd.f32 0.0, %v1374
        %v1376 = vpop.f32.mrf.mxu0
        %1377 = vdwg.mxu0
        %1378 = vmatpush.bf16.msra.mxu0 0
        %1379 = vmatpush.bf16.msra.mxu0 0
        %1380 = vmatpush.bf16.msra.mxu0 0
        %1381 = vmatpush.bf16.msra.mxu0 0
        %1382 = vmatpush.bf16.msra.mxu0 0
        %1383 = vmatpush.bf16.msra.mxu0 0
        %1384 = vmatpush.bf16.msra.mxu0 %v1062
        %1385 = vmatpush.bf16.msra.mxu0 %v998
        %1386 = vmatmul.bf16.gmra.mxu0 %v1246
        %v1387 = vpop.f32.mrf.mxu0
        %v1388 = vadd.f32 0.0, %v1387
        %v1389 = vpop.f32.mrf.mxu0
        %1390 = vdwg.mxu0
        %1391 = vmatpush.bf16.msra.mxu0 0
        %1392 = vmatpush.bf16.msra.mxu0 0
        %1393 = vmatpush.bf16.msra.mxu0 0
        %1394 = vmatpush.bf16.msra.mxu0 0
        %1395 = vmatpush.bf16.msra.mxu0 0
        %1396 = vmatpush.bf16.msra.mxu0 0
        %1397 = vmatpush.bf16.msra.mxu0 %v1063
        %1398 = vmatpush.bf16.msra.mxu0 %v999
        %1399 = vmatmul.bf16.gmra.mxu0 %v1246
        %v1400 = vpop.f32.mrf.mxu0
        %v1401 = vadd.f32 0.0, %v1400
        %v1402 = vpop.f32.mrf.mxu0
        %1403 = vdwg.mxu0
        %1404 = vmatpush.bf16.msra.mxu0 0
        %1405 = vmatpush.bf16.msra.mxu0 0
        %1406 = vmatpush.bf16.msra.mxu0 0
        %1407 = vmatpush.bf16.msra.mxu0 0
        %1408 = vmatpush.bf16.msra.mxu0 0
        %1409 = vmatpush.bf16.msra.mxu0 0
        %1410 = vmatpush.bf16.msra.mxu0 %v1064
        %1411 = vmatpush.bf16.msra.mxu0 %v1000
        %1412 = vmatmul.bf16.gmra.mxu0 %v1246
        %v1413 = vpop.f32.mrf.mxu0
        %v1414 = vadd.f32 0.0, %v1413
        %v1415 = vpop.f32.mrf.mxu0
        %1416 = vdwg.mxu0
        %1417 = vmatpush.bf16.msra.mxu0 0
        %1418 = vmatpush.bf16.msra.mxu0 0
        %1419 = vmatpush.bf16.msra.mxu0 0
        %1420 = vmatpush.bf16.msra.mxu0 0
        %1421 = vmatpush.bf16.msra.mxu0 0
        %1422 = vmatpush.bf16.msra.mxu0 0
        %1423 = vmatpush.bf16.msra.mxu0 %v1065
        %1424 = vmatpush.bf16.msra.mxu0 %v1001
        %1425 = vmatmul.bf16.gmra.mxu0 %v1246
        %v1426 = vpop.f32.mrf.mxu0
        %v1427 = vadd.f32 0.0, %v1426
        %v1428 = vpop.f32.mrf.mxu0
        %1429 = vdwg.mxu0
        %1430 = vmatpush.bf16.msra.mxu0 0
        %1431 = vmatpush.bf16.msra.mxu0 0
        %1432 = vmatpush.bf16.msra.mxu0 0
        %1433 = vmatpush.bf16.msra.mxu0 0
        %1434 = vmatpush.bf16.msra.mxu0 0
        %1435 = vmatpush.bf16.msra.mxu0 0
        %1436 = vmatpush.bf16.msra.mxu0 %v1066
        %1437 = vmatpush.bf16.msra.mxu0 %v1002
        %1438 = vmatmul.bf16.gmra.mxu0 %v1246
        %v1439 = vpop.f32.mrf.mxu0
        %v1440 = vadd.f32 0.0, %v1439
        %v1441 = vpop.f32.mrf.mxu0
        %1442 = vdwg.mxu0
        %1443 = vmatpush.bf16.msra.mxu0 0
        %1444 = vmatpush.bf16.msra.mxu0 0
        %1445 = vmatpush.bf16.msra.mxu0 0
        %1446 = vmatpush.bf16.msra.mxu0 0
        %1447 = vmatpush.bf16.msra.mxu0 0
        %1448 = vmatpush.bf16.msra.mxu0 0
        %1449 = vmatpush.bf16.msra.mxu0 %v1067
        %1450 = vmatpush.bf16.msra.mxu0 %v1003
        %1451 = vmatmul.bf16.gmra.mxu0 %v1246
        %v1452 = vpop.f32.mrf.mxu0
        %v1453 = vadd.f32 0.0, %v1452
        %v1454 = vpop.f32.mrf.mxu0
        %1455 = vdwg.mxu0
        %1456 = vmatpush.bf16.msra.mxu0 0
        %1457 = vmatpush.bf16.msra.mxu0 0
        %1458 = vmatpush.bf16.msra.mxu0 0
        %1459 = vmatpush.bf16.msra.mxu0 0
        %1460 = vmatpush.bf16.msra.mxu0 0
        %1461 = vmatpush.bf16.msra.mxu0 0
        %1462 = vmatpush.bf16.msra.mxu0 %v1068
        %1463 = vmatpush.bf16.msra.mxu0 %v1004
        %1464 = vmatmul.bf16.gmra.mxu0 %v1246
        %v1465 = vpop.f32.mrf.mxu0
        %v1466 = vadd.f32 0.0, %v1465
        %v1467 = vpop.f32.mrf.mxu0
        %1468 = vdwg.mxu0
        %1469 = vmatpush.bf16.msra.mxu0 0
        %1470 = vmatpush.bf16.msra.mxu0 0
        %1471 = vmatpush.bf16.msra.mxu0 0
        %1472 = vmatpush.bf16.msra.mxu0 0
        %1473 = vmatpush.bf16.msra.mxu0 0
        %1474 = vmatpush.bf16.msra.mxu0 0
        %1475 = vmatpush.bf16.msra.mxu0 %v1069
        %1476 = vmatpush.bf16.msra.mxu0 %v1005
        %1477 = vmatmul.bf16.gmra.mxu0 %v1246
        %v1478 = vpop.f32.mrf.mxu0
        %v1479 = vadd.f32 0.0, %v1478
        %v1480 = vpop.f32.mrf.mxu0
        %1481 = vdwg.mxu0
        %1482 = vmatpush.bf16.msra.mxu0 0
        %1483 = vmatpush.bf16.msra.mxu0 0
        %1484 = vmatpush.bf16.msra.mxu0 0
        %1485 = vmatpush.bf16.msra.mxu0 0
        %1486 = vmatpush.bf16.msra.mxu0 0
        %1487 = vmatpush.bf16.msra.mxu0 0
        %1488 = vmatpush.bf16.msra.mxu0 %v1070
        %1489 = vmatpush.bf16.msra.mxu0 %v1006
        %1490 = vmatmul.bf16.gmra.mxu0 %v1246
        %v1491 = vpop.f32.mrf.mxu0
        %v1492 = vadd.f32 0.0, %v1491
        %v1493 = vpop.f32.mrf.mxu0
        %1494 = vdwg.mxu0
        %1495 = vmatpush.bf16.msra.mxu0 0
        %1496 = vmatpush.bf16.msra.mxu0 0
        %1497 = vmatpush.bf16.msra.mxu0 0
        %1498 = vmatpush.bf16.msra.mxu0 0
        %1499 = vmatpush.bf16.msra.mxu0 0
        %1500 = vmatpush.bf16.msra.mxu0 0
        %1501 = vmatpush.bf16.msra.mxu0 %v1071
        %1502 = vmatpush.bf16.msra.mxu0 %v1007
        %1503 = vmatmul.bf16.gmra.mxu0 %v1246
        %v1504 = vpop.f32.mrf.mxu0
        %v1505 = vadd.f32 0.0, %v1504
        %v1506 = vpop.f32.mrf.mxu0
        %1507 = vdwg.mxu0
        %1508 = vmatpush.bf16.msra.mxu0 0
        %1509 = vmatpush.bf16.msra.mxu0 0
        %1510 = vmatpush.bf16.msra.mxu0 0
        %1511 = vmatpush.bf16.msra.mxu0 0
        %1512 = vmatpush.bf16.msra.mxu0 0
        %1513 = vmatpush.bf16.msra.mxu0 0
        %1514 = vmatpush.bf16.msra.mxu0 %v1072
        %1515 = vmatpush.bf16.msra.mxu0 %v1008
        %1516 = vmatmul.bf16.gmra.mxu0 %v1246
        %v1517 = vpop.f32.mrf.mxu0
        %v1518 = vadd.f32 0.0, %v1517
        %v1519 = vpop.f32.mrf.mxu0
        %1520 = vdwg.mxu0
        %1521 = vmatpush.bf16.msra.mxu0 0
        %1522 = vmatpush.bf16.msra.mxu0 0
        %1523 = vmatpush.bf16.msra.mxu0 0
        %1524 = vmatpush.bf16.msra.mxu0 0
        %1525 = vmatpush.bf16.msra.mxu0 0
        %1526 = vmatpush.bf16.msra.mxu0 0
        %1527 = vmatpush.bf16.msra.mxu0 %v1073
        %1528 = vmatpush.bf16.msra.mxu0 %v1009
        %1529 = vmatmul.bf16.gmra.mxu0 %v1246
        %v1530 = vpop.f32.mrf.mxu0
        %v1531 = vadd.f32 0.0, %v1530
        %v1532 = vpop.f32.mrf.mxu0
        %1533 = vdwg.mxu0
        %1534 = vmatpush.bf16.msra.mxu0 0
        %1535 = vmatpush.bf16.msra.mxu0 0
        %1536 = vmatpush.bf16.msra.mxu0 0
        %1537 = vmatpush.bf16.msra.mxu0 0
        %1538 = vmatpush.bf16.msra.mxu0 0
        %1539 = vmatpush.bf16.msra.mxu0 0
        %1540 = vmatpush.bf16.msra.mxu0 %v1074
        %1541 = vmatpush.bf16.msra.mxu0 %v1010
        %1542 = vmatmul.bf16.gmra.mxu0 %v1246
        %v1543 = vpop.f32.mrf.mxu0
        %v1544 = vadd.f32 0.0, %v1543
        %v1545 = vpop.f32.mrf.mxu0
        %1546 = vdwg.mxu0
        %1547 = vmatpush.bf16.msra.mxu0 0
        %1548 = vmatpush.bf16.msra.mxu0 0
        %1549 = vmatpush.bf16.msra.mxu0 0
        %1550 = vmatpush.bf16.msra.mxu0 0
        %1551 = vmatpush.bf16.msra.mxu0 0
        %1552 = vmatpush.bf16.msra.mxu0 0
        %1553 = vmatpush.bf16.msra.mxu0 %v1075
        %1554 = vmatpush.bf16.msra.mxu0 %v1011
        %1555 = vmatmul.bf16.gmra.mxu0 %v1246
        %v1556 = vpop.f32.mrf.mxu0
        %v1557 = vadd.f32 0.0, %v1556
        %v1558 = vpop.f32.mrf.mxu0
        %1559 = vdwg.mxu0
        %1560 = vmatpush.bf16.msra.mxu0 0
        %1561 = vmatpush.bf16.msra.mxu0 0
        %1562 = vmatpush.bf16.msra.mxu0 0
        %1563 = vmatpush.bf16.msra.mxu0 0
        %1564 = vmatpush.bf16.msra.mxu0 0
        %1565 = vmatpush.bf16.msra.mxu0 0
        %1566 = vmatpush.bf16.msra.mxu0 %v1076
        %1567 = vmatpush.bf16.msra.mxu0 %v1012
        %1568 = vmatmul.bf16.gmra.mxu0 %v1246
        %v1569 = vpop.f32.mrf.mxu0
        %v1570 = vadd.f32 0.0, %v1569
        %v1571 = vpop.f32.mrf.mxu0
        %1572 = vdwg.mxu0
        %1573 = vmatpush.bf16.msra.mxu0 0
        %1574 = vmatpush.bf16.msra.mxu0 0
        %1575 = vmatpush.bf16.msra.mxu0 0
        %1576 = vmatpush.bf16.msra.mxu0 0
        %1577 = vmatpush.bf16.msra.mxu0 0
        %1578 = vmatpush.bf16.msra.mxu0 0
        %1579 = vmatpush.bf16.msra.mxu0 %v1077
        %1580 = vmatpush.bf16.msra.mxu0 %v1013
        %1581 = vmatmul.bf16.gmra.mxu0 %v1246
        %v1582 = vpop.f32.mrf.mxu0
        %v1583 = vadd.f32 0.0, %v1582
        %v1584 = vpop.f32.mrf.mxu0
        %1585 = vdwg.mxu0
        %1586 = vmatpush.bf16.msra.mxu0 0
        %1587 = vmatpush.bf16.msra.mxu0 0
        %1588 = vmatpush.bf16.msra.mxu0 0
        %1589 = vmatpush.bf16.msra.mxu0 0
        %1590 = vmatpush.bf16.msra.mxu0 0
        %1591 = vmatpush.bf16.msra.mxu0 0
        %1592 = vmatpush.bf16.msra.mxu0 %v1078
        %1593 = vmatpush.bf16.msra.mxu0 %v1014
        %1594 = vmatmul.bf16.gmra.mxu0 %v1246
        %v1595 = vpop.f32.mrf.mxu0
        %v1596 = vadd.f32 0.0, %v1595
        %v1597 = vpop.f32.mrf.mxu0
        %1598 = vdwg.mxu0
        %1599 = vmatpush.bf16.msra.mxu0 0
        %1600 = vmatpush.bf16.msra.mxu0 0
        %1601 = vmatpush.bf16.msra.mxu0 0
        %1602 = vmatpush.bf16.msra.mxu0 0
        %1603 = vmatpush.bf16.msra.mxu0 0
        %1604 = vmatpush.bf16.msra.mxu0 0
        %1605 = vmatpush.bf16.msra.mxu0 %v1079
        %1606 = vmatpush.bf16.msra.mxu0 %v1015
        %1607 = vmatmul.bf16.gmra.mxu0 %v1246
        %v1608 = vpop.f32.mrf.mxu0
        %v1609 = vadd.f32 0.0, %v1608
        %v1610 = vpop.f32.mrf.mxu0
        %1611 = vdwg.mxu0
        %1612 = vmatpush.bf16.msra.mxu0 0
        %1613 = vmatpush.bf16.msra.mxu0 0
        %1614 = vmatpush.bf16.msra.mxu0 0
        %1615 = vmatpush.bf16.msra.mxu0 0
        %1616 = vmatpush.bf16.msra.mxu0 0
        %1617 = vmatpush.bf16.msra.mxu0 0
        %1618 = vmatpush.bf16.msra.mxu0 %v1080
        %1619 = vmatpush.bf16.msra.mxu0 %v1016
        %1620 = vmatmul.bf16.gmra.mxu0 %v1246
        %v1621 = vpop.f32.mrf.mxu0
        %v1622 = vadd.f32 0.0, %v1621
        %v1623 = vpop.f32.mrf.mxu0
        %1624 = vdwg.mxu0
        %1625 = vmatpush.bf16.msra.mxu0 0
        %1626 = vmatpush.bf16.msra.mxu0 0
        %1627 = vmatpush.bf16.msra.mxu0 0
        %1628 = vmatpush.bf16.msra.mxu0 0
        %1629 = vmatpush.bf16.msra.mxu0 0
        %1630 = vmatpush.bf16.msra.mxu0 0
        %1631 = vmatpush.bf16.msra.mxu0 %v1081
        %1632 = vmatpush.bf16.msra.mxu0 %v1017
        %1633 = vmatmul.bf16.gmra.mxu0 %v1246
        %v1634 = vpop.f32.mrf.mxu0
        %v1635 = vadd.f32 0.0, %v1634
        %v1636 = vpop.f32.mrf.mxu0
        %1637 = vdwg.mxu0
        %1638 = vmatpush.bf16.msra.mxu0 0
        %1639 = vmatpush.bf16.msra.mxu0 0
        %1640 = vmatpush.bf16.msra.mxu0 0
        %1641 = vmatpush.bf16.msra.mxu0 0
        %1642 = vmatpush.bf16.msra.mxu0 0
        %1643 = vmatpush.bf16.msra.mxu0 0
        %1644 = vmatpush.bf16.msra.mxu0 %v1082
        %1645 = vmatpush.bf16.msra.mxu0 %v1018
        %1646 = vmatmul.bf16.gmra.mxu0 %v1246
        %v1647 = vpop.f32.mrf.mxu0
        %v1648 = vadd.f32 0.0, %v1647
        %v1649 = vpop.f32.mrf.mxu0
        %1650 = vdwg.mxu0
        %1651 = vmatpush.bf16.msra.mxu0 0
        %1652 = vmatpush.bf16.msra.mxu0 0
        %1653 = vmatpush.bf16.msra.mxu0 0
        %1654 = vmatpush.bf16.msra.mxu0 0
        %1655 = vmatpush.bf16.msra.mxu0 0
        %1656 = vmatpush.bf16.msra.mxu0 0
        %1657 = vmatpush.bf16.msra.mxu0 %v1083
        %1658 = vmatpush.bf16.msra.mxu0 %v1019
        %1659 = vmatmul.bf16.gmra.mxu0 %v1246
        %v1660 = vpop.f32.mrf.mxu0
        %v1661 = vadd.f32 0.0, %v1660
        %v1662 = vpop.f32.mrf.mxu0
        %1663 = vdwg.mxu0
        %1664 = vmatpush.bf16.msra.mxu0 0
        %1665 = vmatpush.bf16.msra.mxu0 0
        %1666 = vmatpush.bf16.msra.mxu0 0
        %1667 = vmatpush.bf16.msra.mxu0 0
        %1668 = vmatpush.bf16.msra.mxu0 0
        %1669 = vmatpush.bf16.msra.mxu0 0
        %1670 = vmatpush.bf16.msra.mxu0 %v1084
        %1671 = vmatpush.bf16.msra.mxu0 %v1020
        %1672 = vmatmul.bf16.gmra.mxu0 %v1246
        %v1673 = vpop.f32.mrf.mxu0
        %v1674 = vadd.f32 0.0, %v1673
        %v1675 = vpop.f32.mrf.mxu0
        %1676 = vdwg.mxu0
        %1677 = vmatpush.bf16.msra.mxu0 0
        %1678 = vmatpush.bf16.msra.mxu0 0
        %1679 = vmatpush.bf16.msra.mxu0 0
        %1680 = vmatpush.bf16.msra.mxu0 0
        %1681 = vmatpush.bf16.msra.mxu0 0
        %1682 = vmatpush.bf16.msra.mxu0 0
        %1683 = vmatpush.bf16.msra.mxu0 %v1085
        %1684 = vmatpush.bf16.msra.mxu0 %v1021
        %1685 = vmatmul.bf16.gmra.mxu0 %v1246
        %v1686 = vpop.f32.mrf.mxu0
        %v1687 = vadd.f32 0.0, %v1686
        %v1688 = vpop.f32.mrf.mxu0
        %1689 = vdwg.mxu0
        %1690 = vmatpush.bf16.msra.mxu0 0
        %1691 = vmatpush.bf16.msra.mxu0 0
        %1692 = vmatpush.bf16.msra.mxu0 0
        %1693 = vmatpush.bf16.msra.mxu0 0
        %1694 = vmatpush.bf16.msra.mxu0 0
        %1695 = vmatpush.bf16.msra.mxu0 0
        %1696 = vmatpush.bf16.msra.mxu0 %v1086
        %1697 = vmatpush.bf16.msra.mxu0 %v1022
        %1698 = vmatmul.bf16.gmra.mxu0 %v1246
        %v1699 = vpop.f32.mrf.mxu0
        %v1700 = vadd.f32 0.0, %v1699
        %v1701 = vpop.f32.mrf.mxu0
        %1702 = vdwg.mxu0
        %1703 = vmatpush.bf16.msra.mxu0 0
        %1704 = vmatpush.bf16.msra.mxu0 0
        %1705 = vmatpush.bf16.msra.mxu0 0
        %1706 = vmatpush.bf16.msra.mxu0 0
        %1707 = vmatpush.bf16.msra.mxu0 0
        %1708 = vmatpush.bf16.msra.mxu0 0
        %1709 = vmatpush.bf16.msra.mxu0 %v1087
        %1710 = vmatpush.bf16.msra.mxu0 %v1023
        %1711 = vmatmul.bf16.gmra.mxu0 %v1246
        %v1712 = vpop.f32.mrf.mxu0
        %v1713 = vadd.f32 0.0, %v1712
        %v1714 = vpop.f32.mrf.mxu0
        %1715 = vdwg.mxu0
        %1716 = vmatpush.bf16.msra.mxu0 0
        %1717 = vmatpush.bf16.msra.mxu0 0
        %1718 = vmatpush.bf16.msra.mxu0 0
        %1719 = vmatpush.bf16.msra.mxu0 0
        %1720 = vmatpush.bf16.msra.mxu0 0
        %1721 = vmatpush.bf16.msra.mxu0 0
        %1722 = vmatpush.bf16.msra.mxu0 %v1088
        %1723 = vmatpush.bf16.msra.mxu0 %v1024
        %1724 = vmatmul.bf16.gmra.mxu0 %v1246
        %v1725 = vpop.f32.mrf.mxu0
        %v1726 = vadd.f32 0.0, %v1725
        %v1727 = vpop.f32.mrf.mxu0
        %1728 = vdwg.mxu0
        %1729 = vmatpush.bf16.msra.mxu0 0
        %1730 = vmatpush.bf16.msra.mxu0 0
        %1731 = vmatpush.bf16.msra.mxu0 0
        %1732 = vmatpush.bf16.msra.mxu0 0
        %1733 = vmatpush.bf16.msra.mxu0 0
        %1734 = vmatpush.bf16.msra.mxu0 0
        %1735 = vmatpush.bf16.msra.mxu0 %v1089
        %1736 = vmatpush.bf16.msra.mxu0 %v1025
        %1737 = vmatmul.bf16.gmra.mxu0 %v1246
        %v1738 = vpop.f32.mrf.mxu0
        %v1739 = vadd.f32 0.0, %v1738
        %v1740 = vpop.f32.mrf.mxu0
        %1741 = vdwg.mxu0
        %1742 = vmatpush.bf16.msra.mxu0 0
        %1743 = vmatpush.bf16.msra.mxu0 0
        %1744 = vmatpush.bf16.msra.mxu0 0
        %1745 = vmatpush.bf16.msra.mxu0 0
        %1746 = vmatpush.bf16.msra.mxu0 0
        %1747 = vmatpush.bf16.msra.mxu0 0
        %1748 = vmatpush.bf16.msra.mxu0 %v1090
        %1749 = vmatpush.bf16.msra.mxu0 %v1026
        %1750 = vmatmul.bf16.gmra.mxu0 %v1246
        %v1751 = vpop.f32.mrf.mxu0
        %v1752 = vadd.f32 0.0, %v1751
        %v1753 = vpop.f32.mrf.mxu0
        %1754 = vdwg.mxu0
        %1755 = vmatpush.bf16.msra.mxu0 0
        %1756 = vmatpush.bf16.msra.mxu0 0
        %1757 = vmatpush.bf16.msra.mxu0 0
        %1758 = vmatpush.bf16.msra.mxu0 0
        %1759 = vmatpush.bf16.msra.mxu0 0
        %1760 = vmatpush.bf16.msra.mxu0 0
        %1761 = vmatpush.bf16.msra.mxu0 %v1091
        %1762 = vmatpush.bf16.msra.mxu0 %v1027
        %1763 = vmatmul.bf16.gmra.mxu0 %v1246
        %v1764 = vpop.f32.mrf.mxu0
        %v1765 = vadd.f32 0.0, %v1764
        %v1766 = vpop.f32.mrf.mxu0
        %1767 = vdwg.mxu0
        %1768 = vmatpush.bf16.msra.mxu0 0
        %1769 = vmatpush.bf16.msra.mxu0 0
        %1770 = vmatpush.bf16.msra.mxu0 0
        %1771 = vmatpush.bf16.msra.mxu0 0
        %1772 = vmatpush.bf16.msra.mxu0 0
        %1773 = vmatpush.bf16.msra.mxu0 0
        %1774 = vmatpush.bf16.msra.mxu0 %v1092
        %1775 = vmatpush.bf16.msra.mxu0 %v1028
        %1776 = vmatmul.bf16.gmra.mxu0 %v1246
        %v1777 = vpop.f32.mrf.mxu0
        %v1778 = vadd.f32 0.0, %v1777
        %v1779 = vpop.f32.mrf.mxu0
        %1780 = vdwg.mxu0
        %1781 = vmatpush.bf16.msra.mxu0 0
        %1782 = vmatpush.bf16.msra.mxu0 0
        %1783 = vmatpush.bf16.msra.mxu0 0
        %1784 = vmatpush.bf16.msra.mxu0 0
        %1785 = vmatpush.bf16.msra.mxu0 0
        %1786 = vmatpush.bf16.msra.mxu0 0
        %1787 = vmatpush.bf16.msra.mxu0 %v1093
        %1788 = vmatpush.bf16.msra.mxu0 %v1029
        %1789 = vmatmul.bf16.gmra.mxu0 %v1246
        %v1790 = vpop.f32.mrf.mxu0
        %v1791 = vadd.f32 0.0, %v1790
        %v1792 = vpop.f32.mrf.mxu0
        %1793 = vdwg.mxu0
        %1794 = vmatpush.bf16.msra.mxu0 0
        %1795 = vmatpush.bf16.msra.mxu0 0
        %1796 = vmatpush.bf16.msra.mxu0 0
        %1797 = vmatpush.bf16.msra.mxu0 0
        %1798 = vmatpush.bf16.msra.mxu0 0
        %1799 = vmatpush.bf16.msra.mxu0 0
        %1800 = vmatpush.bf16.msra.mxu0 %v1094
        %1801 = vmatpush.bf16.msra.mxu0 %v1030
        %1802 = vmatmul.bf16.gmra.mxu0 %v1246
        %v1803 = vpop.f32.mrf.mxu0
        %v1804 = vadd.f32 0.0, %v1803
        %v1805 = vpop.f32.mrf.mxu0
        %1806 = vdwg.mxu0
        %1807 = vmatpush.bf16.msra.mxu0 0
        %1808 = vmatpush.bf16.msra.mxu0 0
        %1809 = vmatpush.bf16.msra.mxu0 0
        %1810 = vmatpush.bf16.msra.mxu0 0
        %1811 = vmatpush.bf16.msra.mxu0 0
        %1812 = vmatpush.bf16.msra.mxu0 0
        %1813 = vmatpush.bf16.msra.mxu0 %v1095
        %1814 = vmatpush.bf16.msra.mxu0 %v1031
        %1815 = vmatmul.bf16.gmra.mxu0 %v1246
        %v1816 = vpop.f32.mrf.mxu0
        %v1817 = vadd.f32 0.0, %v1816
        %v1818 = vpop.f32.mrf.mxu0
        %1819 = vdwg.mxu0
        %1820 = vmatpush.bf16.msra.mxu0 0
        %1821 = vmatpush.bf16.msra.mxu0 0
        %1822 = vmatpush.bf16.msra.mxu0 0
        %1823 = vmatpush.bf16.msra.mxu0 0
        %1824 = vmatpush.bf16.msra.mxu0 0
        %1825 = vmatpush.bf16.msra.mxu0 0
        %1826 = vmatpush.bf16.msra.mxu0 %v1096
        %1827 = vmatpush.bf16.msra.mxu0 %v1032
        %1828 = vmatmul.bf16.gmra.mxu0 %v1246
        %v1829 = vpop.f32.mrf.mxu0
        %v1830 = vadd.f32 0.0, %v1829
        %v1831 = vpop.f32.mrf.mxu0
        %1832 = vdwg.mxu0
        %1833 = vmatpush.bf16.msra.mxu0 0
        %1834 = vmatpush.bf16.msra.mxu0 0
        %1835 = vmatpush.bf16.msra.mxu0 0
        %1836 = vmatpush.bf16.msra.mxu0 0
        %1837 = vmatpush.bf16.msra.mxu0 0
        %1838 = vmatpush.bf16.msra.mxu0 0
        %1839 = vmatpush.bf16.msra.mxu0 %v1097
        %1840 = vmatpush.bf16.msra.mxu0 %v1033
        %1841 = vmatmul.bf16.gmra.mxu0 %v1246
        %v1842 = vpop.f32.mrf.mxu0
        %v1843 = vadd.f32 0.0, %v1842
        %v1844 = vpop.f32.mrf.mxu0
        %1845 = vdwg.mxu0
        %1846 = vmatpush.bf16.msra.mxu0 0
        %1847 = vmatpush.bf16.msra.mxu0 0
        %1848 = vmatpush.bf16.msra.mxu0 0
        %1849 = vmatpush.bf16.msra.mxu0 0
        %1850 = vmatpush.bf16.msra.mxu0 0
        %1851 = vmatpush.bf16.msra.mxu0 0
        %1852 = vmatpush.bf16.msra.mxu0 %v1098
        %1853 = vmatpush.bf16.msra.mxu0 %v1034
        %1854 = vmatmul.bf16.gmra.mxu0 %v1246
        %v1855 = vpop.f32.mrf.mxu0
        %v1856 = vadd.f32 0.0, %v1855
        %v1857 = vpop.f32.mrf.mxu0
        %1858 = vdwg.mxu0
        %1859 = vmatpush.bf16.msra.mxu0 0
        %1860 = vmatpush.bf16.msra.mxu0 0
        %1861 = vmatpush.bf16.msra.mxu0 0
        %1862 = vmatpush.bf16.msra.mxu0 0
        %1863 = vmatpush.bf16.msra.mxu0 0
        %1864 = vmatpush.bf16.msra.mxu0 0
        %1865 = vmatpush.bf16.msra.mxu0 %v1099
        %1866 = vmatpush.bf16.msra.mxu0 %v1035
        %1867 = vmatmul.bf16.gmra.mxu0 %v1246
        %v1868 = vpop.f32.mrf.mxu0
        %v1869 = vadd.f32 0.0, %v1868
        %v1870 = vpop.f32.mrf.mxu0
        %1871 = vdwg.mxu0
        %1872 = vmatpush.bf16.msra.mxu0 0
        %1873 = vmatpush.bf16.msra.mxu0 0
        %1874 = vmatpush.bf16.msra.mxu0 0
        %1875 = vmatpush.bf16.msra.mxu0 0
        %1876 = vmatpush.bf16.msra.mxu0 0
        %1877 = vmatpush.bf16.msra.mxu0 0
        %1878 = vmatpush.bf16.msra.mxu0 %v1100
        %1879 = vmatpush.bf16.msra.mxu0 %v1036
        %1880 = vmatmul.bf16.gmra.mxu0 %v1246
        %v1881 = vpop.f32.mrf.mxu0
        %v1882 = vadd.f32 0.0, %v1881
        %v1883 = vpop.f32.mrf.mxu0
        %1884 = vdwg.mxu0
        %1885 = vmatpush.bf16.msra.mxu0 0
        %1886 = vmatpush.bf16.msra.mxu0 0
        %1887 = vmatpush.bf16.msra.mxu0 0
        %1888 = vmatpush.bf16.msra.mxu0 0
        %1889 = vmatpush.bf16.msra.mxu0 0
        %1890 = vmatpush.bf16.msra.mxu0 0
        %1891 = vmatpush.bf16.msra.mxu0 %v1101
        %1892 = vmatpush.bf16.msra.mxu0 %v1037
        %1893 = vmatmul.bf16.gmra.mxu0 %v1246
        %v1894 = vpop.f32.mrf.mxu0
        %v1895 = vadd.f32 0.0, %v1894
        %v1896 = vpop.f32.mrf.mxu0
        %1897 = vdwg.mxu0
        %1898 = vmatpush.bf16.msra.mxu0 0
        %1899 = vmatpush.bf16.msra.mxu0 0
        %1900 = vmatpush.bf16.msra.mxu0 0
        %1901 = vmatpush.bf16.msra.mxu0 0
        %1902 = vmatpush.bf16.msra.mxu0 0
        %1903 = vmatpush.bf16.msra.mxu0 0
        %1904 = vmatpush.bf16.msra.mxu0 %v1102
        %1905 = vmatpush.bf16.msra.mxu0 %v1038
        %1906 = vmatmul.bf16.gmra.mxu0 %v1246
        %v1907 = vpop.f32.mrf.mxu0
        %v1908 = vadd.f32 0.0, %v1907
        %v1909 = vpop.f32.mrf.mxu0
        %1910 = vdwg.mxu0
        %1911 = vmatpush.bf16.msra.mxu0 0
        %1912 = vmatpush.bf16.msra.mxu0 0
        %1913 = vmatpush.bf16.msra.mxu0 0
        %1914 = vmatpush.bf16.msra.mxu0 0
        %1915 = vmatpush.bf16.msra.mxu0 0
        %1916 = vmatpush.bf16.msra.mxu0 0
        %1917 = vmatpush.bf16.msra.mxu0 %v1103
        %1918 = vmatpush.bf16.msra.mxu0 %v1039
        %1919 = vmatmul.bf16.gmra.mxu0 %v1246
        %v1920 = vpop.f32.mrf.mxu0
        %v1921 = vadd.f32 0.0, %v1920
        %v1922 = vpop.f32.mrf.mxu0
        %1923 = vdwg.mxu0
        %1924 = vmatpush.bf16.msra.mxu0 0
        %1925 = vmatpush.bf16.msra.mxu0 0
        %1926 = vmatpush.bf16.msra.mxu0 0
        %1927 = vmatpush.bf16.msra.mxu0 0
        %1928 = vmatpush.bf16.msra.mxu0 0
        %1929 = vmatpush.bf16.msra.mxu0 0
        %1930 = vmatpush.bf16.msra.mxu0 %v1104
        %1931 = vmatpush.bf16.msra.mxu0 %v1040
        %1932 = vmatmul.bf16.gmra.mxu0 %v1246
        %v1933 = vpop.f32.mrf.mxu0
        %v1934 = vadd.f32 0.0, %v1933
        %v1935 = vpop.f32.mrf.mxu0
        %1936 = vdwg.mxu0
        %1937 = vmatpush.bf16.msra.mxu0 0
        %1938 = vmatpush.bf16.msra.mxu0 0
        %1939 = vmatpush.bf16.msra.mxu0 0
        %1940 = vmatpush.bf16.msra.mxu0 0
        %1941 = vmatpush.bf16.msra.mxu0 0
        %1942 = vmatpush.bf16.msra.mxu0 0
        %1943 = vmatpush.bf16.msra.mxu0 %v1105
        %1944 = vmatpush.bf16.msra.mxu0 %v1041
        %1945 = vmatmul.bf16.gmra.mxu0 %v1246
        %v1946 = vpop.f32.mrf.mxu0
        %v1947 = vadd.f32 0.0, %v1946
        %v1948 = vpop.f32.mrf.mxu0
        %1949 = vdwg.mxu0
        %1950 = vmatpush.bf16.msra.mxu0 0
        %1951 = vmatpush.bf16.msra.mxu0 0
        %1952 = vmatpush.bf16.msra.mxu0 0
        %1953 = vmatpush.bf16.msra.mxu0 0
        %1954 = vmatpush.bf16.msra.mxu0 0
        %1955 = vmatpush.bf16.msra.mxu0 0
        %1956 = vmatpush.bf16.msra.mxu0 %v1106
        %1957 = vmatpush.bf16.msra.mxu0 %v1042
        %1958 = vmatmul.bf16.gmra.mxu0 %v1246
        %v1959 = vpop.f32.mrf.mxu0
        %v1960 = vadd.f32 0.0, %v1959
        %v1961 = vpop.f32.mrf.mxu0
        %1962 = vdwg.mxu0
        %1963 = vmatpush.bf16.msra.mxu0 0
        %1964 = vmatpush.bf16.msra.mxu0 0
        %1965 = vmatpush.bf16.msra.mxu0 0
        %1966 = vmatpush.bf16.msra.mxu0 0
        %1967 = vmatpush.bf16.msra.mxu0 0
        %1968 = vmatpush.bf16.msra.mxu0 0
        %1969 = vmatpush.bf16.msra.mxu0 %v1107
        %1970 = vmatpush.bf16.msra.mxu0 %v1043
        %1971 = vmatmul.bf16.gmra.mxu0 %v1246
        %v1972 = vpop.f32.mrf.mxu0
        %v1973 = vadd.f32 0.0, %v1972
        %v1974 = vpop.f32.mrf.mxu0
        %1975 = vdwg.mxu0
        %1976 = vmatpush.bf16.msra.mxu0 0
        %1977 = vmatpush.bf16.msra.mxu0 0
        %1978 = vmatpush.bf16.msra.mxu0 0
        %1979 = vmatpush.bf16.msra.mxu0 0
        %1980 = vmatpush.bf16.msra.mxu0 0
        %1981 = vmatpush.bf16.msra.mxu0 0
        %1982 = vmatpush.bf16.msra.mxu0 %v1108
        %1983 = vmatpush.bf16.msra.mxu0 %v1044
        %1984 = vmatmul.bf16.gmra.mxu0 %v1246
        %v1985 = vpop.f32.mrf.mxu0
        %v1986 = vadd.f32 0.0, %v1985
        %v1987 = vpop.f32.mrf.mxu0
        %1988 = vdwg.mxu0
        %1989 = vmatpush.bf16.msra.mxu0 0
        %1990 = vmatpush.bf16.msra.mxu0 0
        %1991 = vmatpush.bf16.msra.mxu0 0
        %1992 = vmatpush.bf16.msra.mxu0 0
        %1993 = vmatpush.bf16.msra.mxu0 0
        %1994 = vmatpush.bf16.msra.mxu0 0
        %1995 = vmatpush.bf16.msra.mxu0 %v1109
        %1996 = vmatpush.bf16.msra.mxu0 %v1045
        %1997 = vmatmul.bf16.gmra.mxu0 %v1246
        %v1998 = vpop.f32.mrf.mxu0
        %v1999 = vadd.f32 0.0, %v1998
        %v2000 = vpop.f32.mrf.mxu0
        %2001 = vdwg.mxu0
        %2002 = vmatpush.bf16.msra.mxu0 0
        %2003 = vmatpush.bf16.msra.mxu0 0
        %2004 = vmatpush.bf16.msra.mxu0 0
        %2005 = vmatpush.bf16.msra.mxu0 0
        %2006 = vmatpush.bf16.msra.mxu0 0
        %2007 = vmatpush.bf16.msra.mxu0 0
        %2008 = vmatpush.bf16.msra.mxu0 %v1110
        %2009 = vmatpush.bf16.msra.mxu0 %v1046
        %2010 = vmatmul.bf16.gmra.mxu0 %v1246
        %v2011 = vpop.f32.mrf.mxu0
        %v2012 = vadd.f32 0.0, %v2011
        %v2013 = vpop.f32.mrf.mxu0
        %2014 = vdwg.mxu0
        %2015 = vmatpush.bf16.msra.mxu0 0
        %2016 = vmatpush.bf16.msra.mxu0 0
        %2017 = vmatpush.bf16.msra.mxu0 0
        %2018 = vmatpush.bf16.msra.mxu0 0
        %2019 = vmatpush.bf16.msra.mxu0 0
        %2020 = vmatpush.bf16.msra.mxu0 0
        %2021 = vmatpush.bf16.msra.mxu0 %v1111
        %2022 = vmatpush.bf16.msra.mxu0 %v1047
        %2023 = vmatmul.bf16.gmra.mxu0 %v1246
        %v2024 = vpop.f32.mrf.mxu0
        %v2025 = vadd.f32 0.0, %v2024
        %v2026 = vpop.f32.mrf.mxu0
        %2027 = vdwg.mxu0
        %2028 = vmatpush.bf16.msra.mxu0 0
        %2029 = vmatpush.bf16.msra.mxu0 0
        %2030 = vmatpush.bf16.msra.mxu0 0
        %2031 = vmatpush.bf16.msra.mxu0 0
        %2032 = vmatpush.bf16.msra.mxu0 0
        %2033 = vmatpush.bf16.msra.mxu0 0
        %2034 = vmatpush.bf16.msra.mxu0 %v1112
        %2035 = vmatpush.bf16.msra.mxu0 %v1048
        %2036 = vmatmul.bf16.gmra.mxu0 %v1246
        %v2037 = vpop.f32.mrf.mxu0
        %v2038 = vadd.f32 0.0, %v2037
        %v2039 = vpop.f32.mrf.mxu0
        %2040 = vdwg.mxu0
        %2041 = vmatpush.bf16.msra.mxu0 0
        %2042 = vmatpush.bf16.msra.mxu0 0
        %2043 = vmatpush.bf16.msra.mxu0 0
        %2044 = vmatpush.bf16.msra.mxu0 0
        %2045 = vmatpush.bf16.msra.mxu0 0
        %2046 = vmatpush.bf16.msra.mxu0 0
        %2047 = vmatpush.bf16.msra.mxu0 %v1113
        %2048 = vmatpush.bf16.msra.mxu0 %v1049
        %2049 = vmatmul.bf16.gmra.mxu0 %v1246
        %v2050 = vpop.f32.mrf.mxu0
        %v2051 = vadd.f32 0.0, %v2050
        %v2052 = vpop.f32.mrf.mxu0
        %2053 = vdwg.mxu0
        %2054 = vmatpush.bf16.msra.mxu0 0
        %2055 = vmatpush.bf16.msra.mxu0 0
        %2056 = vmatpush.bf16.msra.mxu0 0
        %2057 = vmatpush.bf16.msra.mxu0 0
        %2058 = vmatpush.bf16.msra.mxu0 0
        %2059 = vmatpush.bf16.msra.mxu0 0
        %2060 = vmatpush.bf16.msra.mxu0 %v1114
        %2061 = vmatpush.bf16.msra.mxu0 %v1050
        %2062 = vmatmul.bf16.gmra.mxu0 %v1246
        %v2063 = vpop.f32.mrf.mxu0
        %v2064 = vadd.f32 0.0, %v2063
        %v2065 = vpop.f32.mrf.mxu0
        %2066 = vdwg.mxu0
        %2067 = vmatpush.bf16.msra.mxu0 0
        %2068 = vmatpush.bf16.msra.mxu0 0
        %2069 = vmatpush.bf16.msra.mxu0 0
        %2070 = vmatpush.bf16.msra.mxu0 0
        %2071 = vmatpush.bf16.msra.mxu0 0
        %2072 = vmatpush.bf16.msra.mxu0 0
        %2073 = vmatpush.bf16.msra.mxu0 %v1115
        %2074 = vmatpush.bf16.msra.mxu0 %v1051
        %2075 = vmatmul.bf16.gmra.mxu0 %v1246
        %v2076 = vpop.f32.mrf.mxu0
        %v2077 = vadd.f32 0.0, %v2076
        %v2078 = vpop.f32.mrf.mxu0
        %2079 = vdwg.mxu0
        %v2080 = vld [vmem:[%s2] sm:$0xff]
        %2082 = vset.pattern.permute.xlu0 0
        %2083 = vperm.xlu0 %2082, %v2080
        %v2084 = vpop.permute.xlu0 %2083
        %v2086 = vmul.f32 %v1258, %v2084
        %v2087 = vmul.f32 %v1271, %v2084
        %v2088 = vmul.f32 %v1284, %v2084
        %v2089 = vmul.f32 %v1297, %v2084
        %v2090 = vmul.f32 %v1310, %v2084
        %v2091 = vmul.f32 %v1323, %v2084
        %v2092 = vmul.f32 %v1336, %v2084
        %v2093 = vmul.f32 %v1349, %v2084
        %v2094 = vmul.f32 %v1362, %v2084
        %v2095 = vmul.f32 %v1375, %v2084
        %v2096 = vmul.f32 %v1388, %v2084
        %v2097 = vmul.f32 %v1401, %v2084
        %v2098 = vmul.f32 %v1414, %v2084
        %v2099 = vmul.f32 %v1427, %v2084
        %v2100 = vmul.f32 %v1440, %v2084
        %v2101 = vmul.f32 %v1453, %v2084
        %v2102 = vmul.f32 %v1466, %v2084
        %v2103 = vmul.f32 %v1479, %v2084
        %v2104 = vmul.f32 %v1492, %v2084
        %v2105 = vmul.f32 %v1505, %v2084
        %v2106 = vmul.f32 %v1518, %v2084
        %v2107 = vmul.f32 %v1531, %v2084
        %v2108 = vmul.f32 %v1544, %v2084
        %v2109 = vmul.f32 %v1557, %v2084
        %v2110 = vmul.f32 %v1570, %v2084
        %v2111 = vmul.f32 %v1583, %v2084
        %v2112 = vmul.f32 %v1596, %v2084
        %v2113 = vmul.f32 %v1609, %v2084
        %v2114 = vmul.f32 %v1622, %v2084
        %v2115 = vmul.f32 %v1635, %v2084
        %v2116 = vmul.f32 %v1648, %v2084
        %v2117 = vmul.f32 %v1661, %v2084
        %v2118 = vmul.f32 %v1674, %v2084
        %v2119 = vmul.f32 %v1687, %v2084
        %v2120 = vmul.f32 %v1700, %v2084
        %v2121 = vmul.f32 %v1713, %v2084
        %v2122 = vmul.f32 %v1726, %v2084
        %v2123 = vmul.f32 %v1739, %v2084
        %v2124 = vmul.f32 %v1752, %v2084
        %v2125 = vmul.f32 %v1765, %v2084
        %v2126 = vmul.f32 %v1778, %v2084
        %v2127 = vmul.f32 %v1791, %v2084
        %v2128 = vmul.f32 %v1804, %v2084
        %v2129 = vmul.f32 %v1817, %v2084
        %v2130 = vmul.f32 %v1830, %v2084
        %v2131 = vmul.f32 %v1843, %v2084
        %v2132 = vmul.f32 %v1856, %v2084
        %v2133 = vmul.f32 %v1869, %v2084
        %v2134 = vmul.f32 %v1882, %v2084
        %v2135 = vmul.f32 %v1895, %v2084
        %v2136 = vmul.f32 %v1908, %v2084
        %v2137 = vmul.f32 %v1921, %v2084
        %v2138 = vmul.f32 %v1934, %v2084
        %v2139 = vmul.f32 %v1947, %v2084
        %v2140 = vmul.f32 %v1960, %v2084
        %v2141 = vmul.f32 %v1973, %v2084
        %v2142 = vmul.f32 %v1986, %v2084
        %v2143 = vmul.f32 %v1999, %v2084
        %v2144 = vmul.f32 %v2012, %v2084
        %v2145 = vmul.f32 %v2025, %v2084
        %v2146 = vmul.f32 %v2038, %v2084
        %v2147 = vmul.f32 %v2051, %v2084
        %v2148 = vmul.f32 %v2064, %v2084
        %v2149 = vmul.f32 %v2077, %v2084
        %v2150 = vld [vmem:[%s3] sm:$0xff]
        %2152 = vset.pattern.permute.xlu0 0
        %2153 = vperm.xlu0 %2152, %v2150
        %v2154 = vpop.permute.xlu0 %2153
        %v2156 = vadd.f32 %v2086, %v2154
        %v2157 = vadd.f32 %v2087, %v2154
        %v2158 = vadd.f32 %v2088, %v2154
        %v2159 = vadd.f32 %v2089, %v2154
        %v2160 = vadd.f32 %v2090, %v2154
        %v2161 = vadd.f32 %v2091, %v2154
        %v2162 = vadd.f32 %v2092, %v2154
        %v2163 = vadd.f32 %v2093, %v2154
        %v2164 = vadd.f32 %v2094, %v2154
        %v2165 = vadd.f32 %v2095, %v2154
        %v2166 = vadd.f32 %v2096, %v2154
        %v2167 = vadd.f32 %v2097, %v2154
        %v2168 = vadd.f32 %v2098, %v2154
        %v2169 = vadd.f32 %v2099, %v2154
        %v2170 = vadd.f32 %v2100, %v2154
        %v2171 = vadd.f32 %v2101, %v2154
        %v2172 = vadd.f32 %v2102, %v2154
        %v2173 = vadd.f32 %v2103, %v2154
        %v2174 = vadd.f32 %v2104, %v2154
        %v2175 = vadd.f32 %v2105, %v2154
        %v2176 = vadd.f32 %v2106, %v2154
        %v2177 = vadd.f32 %v2107, %v2154
        %v2178 = vadd.f32 %v2108, %v2154
        %v2179 = vadd.f32 %v2109, %v2154
        %v2180 = vadd.f32 %v2110, %v2154
        %v2181 = vadd.f32 %v2111, %v2154
        %v2182 = vadd.f32 %v2112, %v2154
        %v2183 = vadd.f32 %v2113, %v2154
        %v2184 = vadd.f32 %v2114, %v2154
        %v2185 = vadd.f32 %v2115, %v2154
        %v2186 = vadd.f32 %v2116, %v2154
        %v2187 = vadd.f32 %v2117, %v2154
        %v2188 = vadd.f32 %v2118, %v2154
        %v2189 = vadd.f32 %v2119, %v2154
        %v2190 = vadd.f32 %v2120, %v2154
        %v2191 = vadd.f32 %v2121, %v2154
        %v2192 = vadd.f32 %v2122, %v2154
        %v2193 = vadd.f32 %v2123, %v2154
        %v2194 = vadd.f32 %v2124, %v2154
        %v2195 = vadd.f32 %v2125, %v2154
        %v2196 = vadd.f32 %v2126, %v2154
        %v2197 = vadd.f32 %v2127, %v2154
        %v2198 = vadd.f32 %v2128, %v2154
        %v2199 = vadd.f32 %v2129, %v2154
        %v2200 = vadd.f32 %v2130, %v2154
        %v2201 = vadd.f32 %v2131, %v2154
        %v2202 = vadd.f32 %v2132, %v2154
        %v2203 = vadd.f32 %v2133, %v2154
        %v2204 = vadd.f32 %v2134, %v2154
        %v2205 = vadd.f32 %v2135, %v2154
        %v2206 = vadd.f32 %v2136, %v2154
        %v2207 = vadd.f32 %v2137, %v2154
        %v2208 = vadd.f32 %v2138, %v2154
        %v2209 = vadd.f32 %v2139, %v2154
        %v2210 = vadd.f32 %v2140, %v2154
        %v2211 = vadd.f32 %v2141, %v2154
        %v2212 = vadd.f32 %v2142, %v2154
        %v2213 = vadd.f32 %v2143, %v2154
        %v2214 = vadd.f32 %v2144, %v2154
        %v2215 = vadd.f32 %v2145, %v2154
        %v2216 = vadd.f32 %v2146, %v2154
        %v2217 = vadd.f32 %v2147, %v2154
        %v2218 = vadd.f32 %v2148, %v2154
        %v2219 = vadd.f32 %v2149, %v2154
        %v2220 = vmax.f32 %v2156, 0.0
        %v2221 = vmax.f32 %v2157, 0.0
        %v2222 = vmax.f32 %v2158, 0.0
        %v2223 = vmax.f32 %v2159, 0.0
        %v2224 = vmax.f32 %v2160, 0.0
        %v2225 = vmax.f32 %v2161, 0.0
        %v2226 = vmax.f32 %v2162, 0.0
        %v2227 = vmax.f32 %v2163, 0.0
        %v2228 = vmax.f32 %v2164, 0.0
        %v2229 = vmax.f32 %v2165, 0.0
        %v2230 = vmax.f32 %v2166, 0.0
        %v2231 = vmax.f32 %v2167, 0.0
        %v2232 = vmax.f32 %v2168, 0.0
        %v2233 = vmax.f32 %v2169, 0.0
        %v2234 = vmax.f32 %v2170, 0.0
        %v2235 = vmax.f32 %v2171, 0.0
        %v2236 = vmax.f32 %v2172, 0.0
        %v2237 = vmax.f32 %v2173, 0.0
        %v2238 = vmax.f32 %v2174, 0.0
        %v2239 = vmax.f32 %v2175, 0.0
        %v2240 = vmax.f32 %v2176, 0.0
        %v2241 = vmax.f32 %v2177, 0.0
        %v2242 = vmax.f32 %v2178, 0.0
        %v2243 = vmax.f32 %v2179, 0.0
        %v2244 = vmax.f32 %v2180, 0.0
        %v2245 = vmax.f32 %v2181, 0.0
        %v2246 = vmax.f32 %v2182, 0.0
        %v2247 = vmax.f32 %v2183, 0.0
        %v2248 = vmax.f32 %v2184, 0.0
        %v2249 = vmax.f32 %v2185, 0.0
        %v2250 = vmax.f32 %v2186, 0.0
        %v2251 = vmax.f32 %v2187, 0.0
        %v2252 = vmax.f32 %v2188, 0.0
        %v2253 = vmax.f32 %v2189, 0.0
        %v2254 = vmax.f32 %v2190, 0.0
        %v2255 = vmax.f32 %v2191, 0.0
        %v2256 = vmax.f32 %v2192, 0.0
        %v2257 = vmax.f32 %v2193, 0.0
        %v2258 = vmax.f32 %v2194, 0.0
        %v2259 = vmax.f32 %v2195, 0.0
        %v2260 = vmax.f32 %v2196, 0.0
        %v2261 = vmax.f32 %v2197, 0.0
        %v2262 = vmax.f32 %v2198, 0.0
        %v2263 = vmax.f32 %v2199, 0.0
        %v2264 = vmax.f32 %v2200, 0.0
        %v2265 = vmax.f32 %v2201, 0.0
        %v2266 = vmax.f32 %v2202, 0.0
        %v2267 = vmax.f32 %v2203, 0.0
        %v2268 = vmax.f32 %v2204, 0.0
        %v2269 = vmax.f32 %v2205, 0.0
        %v2270 = vmax.f32 %v2206, 0.0
        %v2271 = vmax.f32 %v2207, 0.0
        %v2272 = vmax.f32 %v2208, 0.0
        %v2273 = vmax.f32 %v2209, 0.0
        %v2274 = vmax.f32 %v2210, 0.0
        %v2275 = vmax.f32 %v2211, 0.0
        %v2276 = vmax.f32 %v2212, 0.0
        %v2277 = vmax.f32 %v2213, 0.0
        %v2278 = vmax.f32 %v2214, 0.0
        %v2279 = vmax.f32 %v2215, 0.0
        %v2280 = vmax.f32 %v2216, 0.0
        %v2281 = vmax.f32 %v2217, 0.0
        %v2282 = vmax.f32 %v2218, 0.0
        %v2283 = vmax.f32 %v2219, 0.0
        %2284 = vst [vmem:[%s472] sm:$0xff] %v2220
        %2285 = vst [vmem:[%s472 + $0x8] sm:$0xff] %v2221
        %2286 = vst [vmem:[%s472 + $0x10] sm:$0xff] %v2222
        %2287 = vst [vmem:[%s472 + $0x18] sm:$0xff] %v2223
        %2288 = vst [vmem:[%s472 + $0x20] sm:$0xff] %v2224
        %2289 = vst [vmem:[%s472 + $0x28] sm:$0xff] %v2225
        %2290 = vst [vmem:[%s472 + $0x30] sm:$0xff] %v2226
        %2291 = vst [vmem:[%s472 + $0x38] sm:$0xff] %v2227
        %2292 = vst [vmem:[%s472 + $0x40] sm:$0xff] %v2228
        %2293 = vst [vmem:[%s472 + $0x48] sm:$0xff] %v2229
        %2294 = vst [vmem:[%s472 + $0x50] sm:$0xff] %v2230
        %2295 = vst [vmem:[%s472 + $0x58] sm:$0xff] %v2231
        %2296 = vst [vmem:[%s472 + $0x60] sm:$0xff] %v2232
        %2297 = vst [vmem:[%s472 + $0x68] sm:$0xff] %v2233
        %2298 = vst [vmem:[%s472 + $0x70] sm:$0xff] %v2234
        %2299 = vst [vmem:[%s472 + $0x78] sm:$0xff] %v2235
        %2300 = vst [vmem:[%s472 + $0x80] sm:$0xff] %v2236
        %2301 = vst [vmem:[%s472 + $0x88] sm:$0xff] %v2237
        %2302 = vst [vmem:[%s472 + $0x90] sm:$0xff] %v2238
        %2303 = vst [vmem:[%s472 + $0x98] sm:$0xff] %v2239
        %2304 = vst [vmem:[%s472 + $0xa0] sm:$0xff] %v2240
        %2305 = vst [vmem:[%s472 + $0xa8] sm:$0xff] %v2241
        %2306 = vst [vmem:[%s472 + $0xb0] sm:$0xff] %v2242
        %2307 = vst [vmem:[%s472 + $0xb8] sm:$0xff] %v2243
        %2308 = vst [vmem:[%s472 + $0xc0] sm:$0xff] %v2244
        %2309 = vst [vmem:[%s472 + $0xc8] sm:$0xff] %v2245
        %2310 = vst [vmem:[%s472 + $0xd0] sm:$0xff] %v2246
        %2311 = vst [vmem:[%s472 + $0xd8] sm:$0xff] %v2247
        %2312 = vst [vmem:[%s472 + $0xe0] sm:$0xff] %v2248
        %2313 = vst [vmem:[%s472 + $0xe8] sm:$0xff] %v2249
        %2314 = vst [vmem:[%s472 + $0xf0] sm:$0xff] %v2250
        %2315 = vst [vmem:[%s472 + $0xf8] sm:$0xff] %v2251
        %2316 = vst [vmem:[%s472 + $0x100] sm:$0xff] %v2252
        %2317 = vst [vmem:[%s472 + $0x108] sm:$0xff] %v2253
        %2318 = vst [vmem:[%s472 + $0x110] sm:$0xff] %v2254
        %2319 = vst [vmem:[%s472 + $0x118] sm:$0xff] %v2255
        %2320 = vst [vmem:[%s472 + $0x120] sm:$0xff] %v2256
        %2321 = vst [vmem:[%s472 + $0x128] sm:$0xff] %v2257
        %2322 = vst [vmem:[%s472 + $0x130] sm:$0xff] %v2258
        %2323 = vst [vmem:[%s472 + $0x138] sm:$0xff] %v2259
        %2324 = vst [vmem:[%s472 + $0x140] sm:$0xff] %v2260
        %2325 = vst [vmem:[%s472 + $0x148] sm:$0xff] %v2261
        %2326 = vst [vmem:[%s472 + $0x150] sm:$0xff] %v2262
        %2327 = vst [vmem:[%s472 + $0x158] sm:$0xff] %v2263
        %2328 = vst [vmem:[%s472 + $0x160] sm:$0xff] %v2264
        %2329 = vst [vmem:[%s472 + $0x168] sm:$0xff] %v2265
        %2330 = vst [vmem:[%s472 + $0x170] sm:$0xff] %v2266
        %2331 = vst [vmem:[%s472 + $0x178] sm:$0xff] %v2267
        %2332 = vst [vmem:[%s472 + $0x180] sm:$0xff] %v2268
        %2333 = vst [vmem:[%s472 + $0x188] sm:$0xff] %v2269
        %2334 = vst [vmem:[%s472 + $0x190] sm:$0xff] %v2270
        %2335 = vst [vmem:[%s472 + $0x198] sm:$0xff] %v2271
        %2336 = vst [vmem:[%s472 + $0x1a0] sm:$0xff] %v2272
        %2337 = vst [vmem:[%s472 + $0x1a8] sm:$0xff] %v2273
        %2338 = vst [vmem:[%s472 + $0x1b0] sm:$0xff] %v2274
        %2339 = vst [vmem:[%s472 + $0x1b8] sm:$0xff] %v2275
        %2340 = vst [vmem:[%s472 + $0x1c0] sm:$0xff] %v2276
        %2341 = vst [vmem:[%s472 + $0x1c8] sm:$0xff] %v2277
        %2342 = vst [vmem:[%s472 + $0x1d0] sm:$0xff] %v2278
        %2343 = vst [vmem:[%s472 + $0x1d8] sm:$0xff] %v2279
        %2344 = vst [vmem:[%s472 + $0x1e0] sm:$0xff] %v2280
        %2345 = vst [vmem:[%s472 + $0x1e8] sm:$0xff] %v2281
        %2346 = vst [vmem:[%s472 + $0x1f0] sm:$0xff] %v2282
        %2347 = vst [vmem:[%s472 + $0x1f8] sm:$0xff] %v2283
        %s2348 = smul.u32 64, %s15
        %p2349 = scmp.lt.s32.totalorder %s2348, 895
        %s2350 = scalar_select %p2349, %s2348, 895
        %s2351 = smul.addr %s2350, 8
        %s2352 = scalar_lea.vmem %s4, %s2351
        // Predicated region
        $region60: #{conv3d.1} parent=54 // pred_check
          %p2353 = pneg %p122
        $region61: #{conv3d.1} parent=54 // pred_check_branch
          %2355 = sbr.rel (%p2353) target = $region63
        $region62: #{conv3d.1} parent=54 // pred_region
          %s2356 = smul.u32 64, %s15
        $region63: #{conv3d.1} parent=54 // pred_fallthru
          _
      $region55: #{conv3d.1} parent=5 // pred_fallthru
        _
      %p2357 = scmp.le.s32.totalorder 2, %s10
      // Predicated region
      $region64: #{conv3d.1} parent=5 // pred_check
        %p2358 = pneg %p2357
      $region65: #{conv3d.1} parent=5 // pred_check_branch
        %2360 = sbr.rel (%p2358) target = $region67
      $region66: #{conv3d.1} parent=5 // pred_region
        %s2361 = ssub.s32 %s10, 2
        // Predicated region
        $region68: #{conv3d.1} parent=66 // pred_check
          %p2362 = pneg %p128
        $region69: #{conv3d.1} parent=66 // pred_check_branch
          %2364 = sbr.rel (%p2362) target = $region71
        $region70: #{conv3d.1} parent=66 // pred_region
          %s2365 = smul.u32 64, %s16
          %p2366 = scmp.lt.s32.totalorder %s2365, 895
          %s2367 = scalar_select %p2366, %s2365, 895
          %s2368 = smul.addr %s2367, 8
          %s2369 = scalar_lea.vmem %s4, %s2368
        $region71: #{conv3d.1} parent=66 // pred_fallthru
          _
      $region67: #{conv3d.1} parent=5 // pred_fallthru
        _
    $region6: #{conv3d.1} parent=1 // loop_footer
      %s14 = sadd.s32 1, %s10
    $region7: #{conv3d.1} parent=1 // loop_footer_branch
      %9 = sbr.rel target = $region3
    $region8: #{conv3d.1} parent=1 // loop_exit
      _

</llo_original>
